<compile_context>
chip_gen: v6e
topology: v6e:2x2x1
jax: 0.10.0
libtpu: 0.0.40
codegen_flags: <defaults>
</compile_context>

<pallas_src>
import functools

import jax
import jax.numpy as jnp
import numpy as np
from jax.experimental import pallas as pl
from jax.experimental.pallas import tpu as pltpu


def _window_attn_kernel(x_ref, wqkv_ref, bqkv_ref, wproj_ref, bproj_ref,
                        sel_ref, mask_ref, o_ref,
                        q_scr, k_scr, v_scr, attn_scr, *,
                        num_heads, head_dim, bw, n_tok, n_mask, have_mask):
    C = num_heads * head_dim

    # ---- fused QKV projection over the whole (bw*N, C) block (big-M matmul).
    # Scale is already folded into the q columns of wqkv/bqkv.
    qkv = jnp.dot(x_ref[...], wqkv_ref[...],
                  preferred_element_type=jnp.float32) + bqkv_ref[...]
    # One-time column split + bf16 cast into scratch (hoisted out of the loop).
    q_scr[...] = qkv[:, 0 * C:1 * C].astype(jnp.bfloat16)
    k_scr[...] = qkv[:, 1 * C:2 * C].astype(jnp.bfloat16)
    v_scr[...] = qkv[:, 2 * C:3 * C].astype(jnp.bfloat16)

    sel = sel_ref[...]                                   # (H*N, C) bf16 0/1
    qkt_dims = (((1,), (1,)), ((), ()))                  # A @ B^T

    def body(w, carry):
        r0 = pl.multiple_of(w * n_tok, n_tok)
        q_w = q_scr[pl.ds(r0, n_tok), :]                 # (N, C) bf16
        k_w = k_scr[pl.ds(r0, n_tok), :]
        v_w = v_scr[pl.ds(r0, n_tok), :]

        # Heads fill the lane axis: K~/V~ are (H*N, C) with head h's data in
        # rows [h*N,(h+1)*N) x cols [h*hd,(h+1)*hd), zeros elsewhere.
        k_blk = jnp.tile(k_w, (num_heads, 1)) * sel
        v_blk = jnp.tile(v_w, (num_heads, 1)) * sel

        s = jax.lax.dot_general(q_w, k_blk, qkt_dims,
                                preferred_element_type=jnp.float32)  # (N, H*N)
        if have_mask:
            s = s + mask_ref[w % n_mask]                 # pre-tiled (N, H*N)
        # Row-max subtraction: per-head softmax is invariant to any per-row
        # shift; safe here since the SwinIR mask is shared across heads.
        s = s - jnp.max(s, axis=-1, keepdims=True)
        e = jnp.exp(s).astype(jnp.bfloat16)

        num = jnp.dot(e, v_blk, preferred_element_type=jnp.float32)  # (N, C)
        den = jnp.dot(e, sel, preferred_element_type=jnp.float32)    # (N, C)
        # Full (N, C) row store (no 8-lane masked column stores).
        attn_scr[pl.ds(r0, n_tok), :] = (num / den).astype(jnp.bfloat16)
        return carry

    jax.lax.fori_loop(0, bw, body, 0)

    # ---- single big-M output projection over the assembled bf16 slab.
    out = jnp.dot(attn_scr[...], wproj_ref[...],
                  preferred_element_type=jnp.float32) + bproj_ref[...]
    o_ref[...] = out.astype(o_ref.dtype)


def _pick_block(groups, nW, N, C, num_heads, out_elem_bytes,
                target_rows=2048, budget_bytes=40 * 1024 * 1024,
                max_rows=8192):
    """Largest nW-multiple block fitting the VMEM budget; only split into a
    multi-step grid (v7x megacore) when each step keeps >= target_rows."""
    HN = num_heads * N
    resident = (C * 3 * C * 2 + 3 * C * 4            # wqkv bf16, bqkv f32
                + C * C * 2 + C * 4                  # wproj bf16, bproj f32
                + HN * C * 2                         # head selector bf16
                + nW * N * HN * 4)                   # mask f32 (lane-tiled)

    def footprint(g):
        rows = g * nW * N
        return (resident
                + 2 * rows * C * 2                   # x block, dbl-buffered bf16
                + 2 * rows * C * out_elem_bytes      # out block, dbl-buffered
                + 3 * rows * C * 2                   # q/k/v scratch bf16
                + rows * C * 2                       # attn scratch bf16
                + rows * 3 * C * 4                   # transient f32 qkv value
                + rows * C * 4)                      # transient f32 proj value

    divisors = [g for g in range(1, groups + 1) if groups % g == 0]
    fitting = [g for g in divisors
               if footprint(g) <= budget_bytes and g * nW * N <= max_rows]
    if not fitting:
        fitting = [1]
    best = max(fitting)
    if groups // best < 2:
        multi = [g for g in fitting
                 if groups // g >= 2 and g * nW * N >= target_rows]
        if multi:
            best = max(multi)
    return best, footprint(best)


def window_attention(x, wqkv, bqkv, wproj, bproj, mask, *, num_heads):
    """x: (B_, N, C); wqkv: (C, 3C); bqkv: (3C,); wproj: (C, C); bproj: (C,);
    mask: (nW, N, N) or None."""
    B_, N, C = x.shape
    assert C % num_heads == 0
    assert N % 8 == 0, "window tokens must be a multiple of 8 (sublane tiling)"
    head_dim = C // num_heads
    scale = float(head_dim) ** (-0.5)
    HN = num_heads * N

    have_mask = mask is not None
    if have_mask:
        nW = mask.shape[0]
        # Pre-tile along lanes so each head's (N, N) mask lands on its score
        # columns; stays resident in VMEM (constant index map).
        mask_arr = jnp.tile(mask.astype(jnp.float32), (1, 1, num_heads))
    else:
        nW = 1
        mask_arr = jnp.zeros((1, N, HN), dtype=jnp.float32)
    assert B_ % nW == 0
    groups = B_ // nW

    out_elem_bytes = jnp.dtype(x.dtype).itemsize
    bw_groups, fp = _pick_block(groups, nW, N, C, num_heads, out_elem_bytes)
    BW = bw_groups * nW
    grid = (B_ // BW,)
    # Size the scoped VMEM limit from the actual footprint; cap at 48 MiB so
    # the same tile choice stays safe on v7x (64 MiB physical VMEM).
    vmem_limit = int(min(48 * 1024 * 1024,
                         max(32 * 1024 * 1024, fp + 8 * 1024 * 1024)))

    # Fold the attention scale into the q columns of the qkv projection so no
    # in-kernel scale multiply is needed; cast weights to bf16 for the MXU.
    col_scale = jnp.concatenate([
        jnp.full((C,), scale, dtype=jnp.float32),
        jnp.ones((2 * C,), dtype=jnp.float32)])
    wqkv_s = (wqkv.astype(jnp.float32) * col_scale[None, :]).astype(jnp.bfloat16)
    bqkv_s = (bqkv.astype(jnp.float32) * col_scale).reshape(1, 3 * C)
    wproj_b = wproj.astype(jnp.bfloat16)
    bproj_2 = bproj.astype(jnp.float32).reshape(1, C)

    # (H*N, C) 0/1 head selector: row block h <-> column block h.
    sel = (jnp.arange(HN)[:, None] // N ==
           jnp.arange(C)[None, :] // head_dim).astype(jnp.bfloat16)

    # Stream x in bf16: halves DMA bytes and the x double-buffer.
    x2d = x.reshape(B_ * N, C).astype(jnp.bfloat16)

    kernel = functools.partial(
        _window_attn_kernel, num_heads=num_heads, head_dim=head_dim,
        bw=BW, n_tok=N, n_mask=nW, have_mask=have_mask)

    out2d = pl.pallas_call(
        kernel,
        out_shape=jax.ShapeDtypeStruct((B_ * N, C), x.dtype),
        grid_spec=pltpu.PrefetchScalarGridSpec(
            num_scalar_prefetch=0,
            grid=grid,
            in_specs=[
                pl.BlockSpec((BW * N, C), lambda b: (b, 0)),      # x (streamed)
                pl.BlockSpec((C, 3 * C), lambda b: (0, 0)),       # wqkv (resident)
                pl.BlockSpec((1, 3 * C), lambda b: (0, 0)),       # bqkv (resident)
                pl.BlockSpec((C, C), lambda b: (0, 0)),           # wproj (resident)
                pl.BlockSpec((1, C), lambda b: (0, 0)),           # bproj (resident)
                pl.BlockSpec((HN, C), lambda b: (0, 0)),          # head selector
                pl.BlockSpec((nW, N, HN), lambda b: (0, 0, 0)),   # mask (resident)
            ],
            out_specs=pl.BlockSpec((BW * N, C), lambda b: (b, 0)),
            scratch_shapes=[
                pltpu.VMEM((BW * N, C), jnp.bfloat16),   # q
                pltpu.VMEM((BW * N, C), jnp.bfloat16),   # k
                pltpu.VMEM((BW * N, C), jnp.bfloat16),   # v
                pltpu.VMEM((BW * N, C), jnp.bfloat16),   # per-window attn out
            ],
        ),
        compiler_params=pltpu.CompilerParams(
            dimension_semantics=("parallel",),
            vmem_limit_bytes=vmem_limit),
    )(x2d, wqkv_s, bqkv_s, wproj_b, bproj_2, sel, mask_arr)

    return out2d.reshape(B_, N, C)


def window_attention_ref(x, wqkv, bqkv, wproj, bproj, mask, *, num_heads):
    """Pure-JAX f32 reference mirroring the PyTorch forward."""
    B_, N, C = x.shape
    hd = C // num_heads
    scale = float(hd) ** (-0.5)
    qkv = x @ wqkv + bqkv                                   # (B_, N, 3C)
    qkv = qkv.reshape(B_, N, 3, num_heads, hd)
    qkv = jnp.transpose(qkv, (2, 0, 3, 1, 4))               # (3, B_, H, N, hd)
    q, k, v = qkv[0], qkv[1], qkv[2]
    attn = jnp.einsum('bhqd,bhkd->bhqk', q, k) * scale      # (B_, H, N, N)
    if mask is not None:
        nW = mask.shape[0]
        attn = attn.reshape(B_ // nW, nW, num_heads, N, N)
        attn = attn + mask[None, :, None]
        attn = attn.reshape(B_, num_heads, N, N)
    attn = jax.nn.softmax(attn, axis=-1)
    out = jnp.einsum('bhqk,bhkd->bhqd', attn, v)            # (B_, H, N, hd)
    out = jnp.transpose(out, (0, 2, 1, 3)).reshape(B_, N, C)
    return out @ wproj + bproj


if __name__ == "__main__":
    # Module config (small): dim=32, num_heads=4, window_size=8 -> N=64
    dim = 32
    num_heads = 4
    window_size = 8
    N = window_size * window_size
    nW = 4          # number of distinct window masks
    batch = 2
    B_ = batch * nW

    key = jax.random.PRNGKey(0)
    k_x, k_wq, k_bq, k_wp, k_bp, k_m = jax.random.split(key, 6)

    x = jax.random.normal(k_x, (B_, N, dim), dtype=jnp.float32)
    wqkv = 0.05 * jax.random.normal(k_wq, (dim, 3 * dim), dtype=jnp.float32)
    bqkv = 0.01 * jax.random.normal(k_bq, (3 * dim,), dtype=jnp.float32)
    wproj = 0.05 * jax.random.normal(k_wp, (dim, dim), dtype=jnp.float32)
    bproj = 0.01 * jax.random.normal(k_bp, (dim,), dtype=jnp.float32)
    mask_bits = jax.random.bernoulli(k_m, 0.2, (nW, N, N))
    mask = jnp.where(mask_bits, -100.0, 0.0).astype(jnp.float32)

    # Masked path
    out = window_attention(x, wqkv, bqkv, wproj, bproj, mask,
                           num_heads=num_heads)
    out = jax.block_until_ready(out)
    ref = window_attention_ref(x, wqkv, bqkv, wproj, bproj, mask,
                               num_heads=num_heads)
    # bf16 matmul operands (f32 accumulate / f32 softmax normalization) ->
    # looser tolerance than pure f32, still far above expected bf16 error.
    np.testing.assert_allclose(np.asarray(out), np.asarray(ref),
                               rtol=2e-2, atol=2e-3)

    # mask=None path (mask add skipped in-kernel)
    out_nm = window_attention(x, wqkv, bqkv, wproj, bproj, None,
                              num_heads=num_heads)
    out_nm = jax.block_until_ready(out_nm)
    ref_nm = window_attention_ref(x, wqkv, bqkv, wproj, bproj, None,
                                  num_heads=num_heads)
    np.testing.assert_allclose(np.asarray(out_nm), np.asarray(ref_nm),
                               rtol=2e-2, atol=2e-3)

    print("KERNEL_OK")
</pallas_src>

<mosaic_0001>
module attributes {stable_mosaic.version = 11 : i64} {
  func.func @_window_attn_kernel(%arg0: i32, %arg1: memref<512x32xbf16, #tpu.memory_space<vmem>>, %arg2: memref<32x96xbf16, #tpu.memory_space<vmem>>, %arg3: memref<1x96xf32, #tpu.memory_space<vmem>>, %arg4: memref<32x32xbf16, #tpu.memory_space<vmem>>, %arg5: memref<1x32xf32, #tpu.memory_space<vmem>>, %arg6: memref<256x32xbf16, #tpu.memory_space<vmem>>, %arg7: memref<4x64x256xf32, #tpu.memory_space<vmem>>, %arg8: memref<512x32xf32, #tpu.memory_space<vmem>>, %arg9: memref<512x32xbf16, #tpu.memory_space<vmem>>, %arg10: memref<512x32xbf16, #tpu.memory_space<vmem>>, %arg11: memref<512x32xbf16, #tpu.memory_space<vmem>>, %arg12: memref<512x32xbf16, #tpu.memory_space<vmem>>) attributes {dimension_semantics = [#tpu.dimension_semantics<parallel>], iteration_bounds = array<i64: 1>, scalar_prefetch = 0 : i64, scratch_operands = 4 : i64, tpu.core_type = #tpu.core_type<tc>, window_params = [{transform_indices = @transform_0, window_bounds = array<i64: 512, 32>}, {pipeline_mode = #tpu.pipeline_mode<synchronous>, transform_indices = @transform_1, window_bounds = array<i64: 32, 96>}, {pipeline_mode = #tpu.pipeline_mode<synchronous>, transform_indices = @transform_2, window_bounds = array<i64: 1, 96>}, {pipeline_mode = #tpu.pipeline_mode<synchronous>, transform_indices = @transform_3, window_bounds = array<i64: 32, 32>}, {pipeline_mode = #tpu.pipeline_mode<synchronous>, transform_indices = @transform_4, window_bounds = array<i64: 1, 32>}, {pipeline_mode = #tpu.pipeline_mode<synchronous>, transform_indices = @transform_5, window_bounds = array<i64: 256, 32>}, {pipeline_mode = #tpu.pipeline_mode<synchronous>, transform_indices = @transform_6, window_bounds = array<i64: 4, 64, 256>}, {transform_indices = @transform_7, window_bounds = array<i64: 512, 32>}]} {
    %c0 = arith.constant 0 : index
    %c0_0 = arith.constant 0 : index
    %0 = vector.load %arg1[%c0, %c0_0] : memref<512x32xbf16, #tpu.memory_space<vmem>>, vector<512x32xbf16>
    %c0_1 = arith.constant 0 : index
    %c0_2 = arith.constant 0 : index
    %1 = vector.load %arg2[%c0_1, %c0_2] : memref<32x96xbf16, #tpu.memory_space<vmem>>, vector<32x96xbf16>
    %cst = arith.constant dense<0.000000e+00> : vector<512x96xf32>
    %2 = tpu.matmul %0, %1, %cst {dimension_numbers = #tpu.dot_dimension_numbers<[1], [0], [0], [1], [0, 0, 1, 1], [], []>} : vector<512x32xbf16>, vector<32x96xbf16>, vector<512x96xf32> -> vector<512x96xf32>
    %c0_3 = arith.constant 0 : index
    %c0_4 = arith.constant 0 : index
    %3 = vector.load %arg3[%c0_3, %c0_4] : memref<1x96xf32, #tpu.memory_space<vmem>>, vector<1x96xf32>
    %4 = vector.broadcast %3 : vector<1x96xf32> to vector<512x96xf32>
    %5 = arith.addf %2, %4 : vector<512x96xf32>
    %6 = vector.extract_strided_slice %5 {offsets = [0, 0], sizes = [512, 32], strides = [1, 1]} : vector<512x96xf32> to vector<512x32xf32>
    %7 = arith.truncf %6 : vector<512x32xf32> to vector<512x32xbf16>
    %c0_5 = arith.constant 0 : index
    %c0_6 = arith.constant 0 : index
    %8 = vector.load %arg9[%c0_5, %c0_6] : memref<512x32xbf16, #tpu.memory_space<vmem>>, vector<512x32xbf16>
    tpu.vector_store %arg9[%c0_5, %c0_6], %7 {strides = array<i32>} : memref<512x32xbf16, #tpu.memory_space<vmem>>, vector<512x32xbf16>,
    %9 = vector.extract_strided_slice %5 {offsets = [0, 32], sizes = [512, 32], strides = [1, 1]} : vector<512x96xf32> to vector<512x32xf32>
    %10 = arith.truncf %9 : vector<512x32xf32> to vector<512x32xbf16>
    %c0_7 = arith.constant 0 : index
    %c0_8 = arith.constant 0 : index
    %11 = vector.load %arg10[%c0_7, %c0_8] : memref<512x32xbf16, #tpu.memory_space<vmem>>, vector<512x32xbf16>
    tpu.vector_store %arg10[%c0_7, %c0_8], %10 {strides = array<i32>} : memref<512x32xbf16, #tpu.memory_space<vmem>>, vector<512x32xbf16>,
    %12 = vector.extract_strided_slice %5 {offsets = [0, 64], sizes = [512, 32], strides = [1, 1]} : vector<512x96xf32> to vector<512x32xf32>
    %13 = arith.truncf %12 : vector<512x32xf32> to vector<512x32xbf16>
    %c0_9 = arith.constant 0 : index
    %c0_10 = arith.constant 0 : index
    %14 = vector.load %arg11[%c0_9, %c0_10] : memref<512x32xbf16, #tpu.memory_space<vmem>>, vector<512x32xbf16>
    tpu.vector_store %arg11[%c0_9, %c0_10], %13 {strides = array<i32>} : memref<512x32xbf16, #tpu.memory_space<vmem>>, vector<512x32xbf16>,
    %c0_11 = arith.constant 0 : index
    %c0_12 = arith.constant 0 : index
    %15 = vector.load %arg6[%c0_11, %c0_12] : memref<256x32xbf16, #tpu.memory_space<vmem>>, vector<256x32xbf16>
    %c0_i32 = arith.constant 0 : i32
    %c8_i32 = arith.constant 8 : i32
    %16 = arith.addi %c0_i32, %c8_i32 : i32
    %c1_i32 = arith.constant 1 : i32
    scf.for %arg13 = %c0_i32 to %16 step %c1_i32  : i32 {
      %c64_i32 = arith.constant 64 : i32
      %24 = arith.muli %arg13, %c64_i32 : i32
      %25 = tpu.assume_multiple %24, 64 : i32
      %26 = arith.index_cast %25 : i32 to index
      %c0_23 = arith.constant 0 : index
      %27 = vector.load %arg9[%26, %c0_23] : memref<512x32xbf16, #tpu.memory_space<vmem>>, vector<64x32xbf16>
      %28 = arith.index_cast %25 : i32 to index
      %c0_24 = arith.constant 0 : index
      %29 = vector.load %arg10[%28, %c0_24] : memref<512x32xbf16, #tpu.memory_space<vmem>>, vector<64x32xbf16>
      %30 = arith.index_cast %25 : i32 to index
      %c0_25 = arith.constant 0 : index
      %31 = vector.load %arg11[%30, %c0_25] : memref<512x32xbf16, #tpu.memory_space<vmem>>, vector<64x32xbf16>
      %32 = tpu.concatenate %29, %29, %29, %29 in 0 : vector<64x32xbf16>, vector<64x32xbf16>, vector<64x32xbf16>, vector<64x32xbf16> -> vector<256x32xbf16>
      %33 = arith.mulf %32, %15 : vector<256x32xbf16>
      %34 = tpu.concatenate %31, %31, %31, %31 in 0 : vector<64x32xbf16>, vector<64x32xbf16>, vector<64x32xbf16>, vector<64x32xbf16> -> vector<256x32xbf16>
      %35 = arith.mulf %34, %15 : vector<256x32xbf16>
      %cst_26 = arith.constant dense<0.000000e+00> : vector<64x256xf32>
      %36 = tpu.matmul %27, %33, %cst_26 {dimension_numbers = #tpu.dot_dimension_numbers<[1], [1], [0], [0], [0, 0, 1, 0], [], []>} : vector<64x32xbf16>, vector<256x32xbf16>, vector<64x256xf32> -> vector<64x256xf32>
      %c4_i32 = arith.constant 4 : i32
      %c0_i32_27 = arith.constant 0 : i32
      %37 = arith.cmpi eq, %c4_i32, %c0_i32_27 : i32
      %c1_i32_28 = arith.constant 1 : i32
      %38 = arith.select %37, %c1_i32_28, %c4_i32 : i32
      %39 = arith.remsi %arg13, %38 : i32
      %c0_i32_29 = arith.constant 0 : i32
      %40 = arith.cmpi ne, %39, %c0_i32_29 : i32
      %c0_i32_30 = arith.constant 0 : i32
      %41 = arith.cmpi slt, %39, %c0_i32_30 : i32
      %c0_i32_31 = arith.constant 0 : i32
      %42 = arith.cmpi slt, %38, %c0_i32_31 : i32
      %43 = arith.xori %41, %42 : i1
      %44 = arith.andi %43, %40 : i1
      %45 = arith.addi %39, %38 : i32
      %46 = arith.select %44, %45, %39 : i32
      %47 = arith.index_cast %46 : i32 to index
      %c0_32 = arith.constant 0 : index
      %c0_33 = arith.constant 0 : index
      %48 = vector.load %arg7[%47, %c0_32, %c0_33] : memref<4x64x256xf32, #tpu.memory_space<vmem>>, vector<1x64x256xf32>
      %49 = vector.shape_cast %48 : vector<1x64x256xf32> to vector<64x256xf32>
      %50 = arith.addf %36, %49 : vector<64x256xf32>
      %cst_34 = arith.constant dense<0xFF800000> : vector<64xf32>
      %51 = vector.multi_reduction <maximumf>, %50, %cst_34 [1] : vector<64x256xf32> to vector<64xf32>
      %52 = vector.shape_cast %51 : vector<64xf32> to vector<64x1xf32>
      %53 = vector.broadcast %52 : vector<64x1xf32> to vector<64x256xf32>
      %54 = arith.subf %50, %53 : vector<64x256xf32>
      %55 = math.exp %54 : vector<64x256xf32>
      %56 = arith.truncf %55 : vector<64x256xf32> to vector<64x256xbf16>
      %cst_35 = arith.constant dense<0.000000e+00> : vector<64x32xf32>
      %57 = tpu.matmul %56, %35, %cst_35 {dimension_numbers = #tpu.dot_dimension_numbers<[1], [0], [0], [1], [0, 0, 1, 1], [], []>} : vector<64x256xbf16>, vector<256x32xbf16>, vector<64x32xf32> -> vector<64x32xf32>
      %cst_36 = arith.constant dense<0.000000e+00> : vector<64x32xf32>
      %58 = tpu.matmul %56, %15, %cst_36 {dimension_numbers = #tpu.dot_dimension_numbers<[1], [0], [0], [1], [0, 0, 1, 1], [], []>} : vector<64x256xbf16>, vector<256x32xbf16>, vector<64x32xf32> -> vector<64x32xf32>
      %59 = arith.divf %57, %58 : vector<64x32xf32>
      %60 = arith.truncf %59 : vector<64x32xf32> to vector<64x32xbf16>
      %61 = arith.index_cast %25 : i32 to index
      %c0_37 = arith.constant 0 : index
      %62 = vector.load %arg12[%61, %c0_37] : memref<512x32xbf16, #tpu.memory_space<vmem>>, vector<64x32xbf16>
      tpu.vector_store %arg12[%61, %c0_37], %60 {strides = array<i32>} : memref<512x32xbf16, #tpu.memory_space<vmem>>, vector<64x32xbf16>,
    }
    %c8_i32_13 = arith.constant 8 : i32
    %c0_14 = arith.constant 0 : index
    %c0_15 = arith.constant 0 : index
    %17 = vector.load %arg12[%c0_14, %c0_15] : memref<512x32xbf16, #tpu.memory_space<vmem>>, vector<512x32xbf16>
    %c0_16 = arith.constant 0 : index
    %c0_17 = arith.constant 0 : index
    %18 = vector.load %arg4[%c0_16, %c0_17] : memref<32x32xbf16, #tpu.memory_space<vmem>>, vector<32x32xbf16>
    %cst_18 = arith.constant dense<0.000000e+00> : vector<512x32xf32>
    %19 = tpu.matmul %17, %18, %cst_18 {dimension_numbers = #tpu.dot_dimension_numbers<[1], [0], [0], [1], [0, 0, 1, 1], [], []>} : vector<512x32xbf16>, vector<32x32xbf16>, vector<512x32xf32> -> vector<512x32xf32>
    %c0_19 = arith.constant 0 : index
    %c0_20 = arith.constant 0 : index
    %20 = vector.load %arg5[%c0_19, %c0_20] : memref<1x32xf32, #tpu.memory_space<vmem>>, vector<1x32xf32>
    %21 = vector.broadcast %20 : vector<1x32xf32> to vector<512x32xf32>
    %22 = arith.addf %19, %21 : vector<512x32xf32>
    %c0_21 = arith.constant 0 : index
    %c0_22 = arith.constant 0 : index
    %23 = vector.load %arg8[%c0_21, %c0_22] : memref<512x32xf32, #tpu.memory_space<vmem>>, vector<512x32xf32>
    tpu.vector_store %arg8[%c0_21, %c0_22], %22 {strides = array<i32>} : memref<512x32xf32, #tpu.memory_space<vmem>>, vector<512x32xf32>,
    return
  }
  func.func @transform_0(%arg0: i32) -> (i32, i32) {
    %c0_i32 = arith.constant 0 : i32
    %c0_i32_0 = arith.constant 0 : i32
    return %arg0, %c0_i32 : i32, i32
  }
  func.func @transform_1(%arg0: i32) -> (i32, i32) {
    %c0_i32 = arith.constant 0 : i32
    %c0_i32_0 = arith.constant 0 : i32
    %c0_i32_1 = arith.constant 0 : i32
    return %c0_i32, %c0_i32_0 : i32, i32
  }
  func.func @transform_2(%arg0: i32) -> (i32, i32) {
    %c0_i32 = arith.constant 0 : i32
    %c0_i32_0 = arith.constant 0 : i32
    %c0_i32_1 = arith.constant 0 : i32
    return %c0_i32, %c0_i32_0 : i32, i32
  }
  func.func @transform_3(%arg0: i32) -> (i32, i32) {
    %c0_i32 = arith.constant 0 : i32
    %c0_i32_0 = arith.constant 0 : i32
    %c0_i32_1 = arith.constant 0 : i32
    return %c0_i32, %c0_i32_0 : i32, i32
  }
  func.func @transform_4(%arg0: i32) -> (i32, i32) {
    %c0_i32 = arith.constant 0 : i32
    %c0_i32_0 = arith.constant 0 : i32
    %c0_i32_1 = arith.constant 0 : i32
    return %c0_i32, %c0_i32_0 : i32, i32
  }
  func.func @transform_5(%arg0: i32) -> (i32, i32) {
    %c0_i32 = arith.constant 0 : i32
    %c0_i32_0 = arith.constant 0 : i32
    %c0_i32_1 = arith.constant 0 : i32
    return %c0_i32, %c0_i32_0 : i32, i32
  }
  func.func @transform_6(%arg0: i32) -> (i32, i32, i32) {
    %c0_i32 = arith.constant 0 : i32
    %c0_i32_0 = arith.constant 0 : i32
    %c0_i32_1 = arith.constant 0 : i32
    %c0_i32_2 = arith.constant 0 : i32
    return %c0_i32, %c0_i32_0, %c0_i32_1 : i32, i32, i32
  }
  func.func @transform_7(%arg0: i32) -> (i32, i32) {
    %c0_i32 = arith.constant 0 : i32
    %c0_i32_0 = arith.constant 0 : i32
    return %arg0, %c0_i32 : i32, i32
  }
}

</mosaic_0001>

<llo_original>
// kernel: tpu_custom_call.1
$region0: #{tpu_custom_call.1}
  #allocation0 [shape = 'u32[]', space=smem, size = 0x4, offset = 0x4, fixed_abs, tag = 'smem constant byte address 0x4 - core index']
  #allocation1 [shape = 'u32[144,128]{1,0:T(1,128)}', space=vmem, size = 0x12000, scoped, tag = 'internal scratch']
  #allocation2 [shape = 'bf16[512,32]{1,0:T(8,128)(2,1)}', space=vmem, size = 0x20000, scoped, tag = 'scratch operand']
  #allocation3 [shape = 'bf16[512,32]{1,0:T(8,128)(2,1)}', space=vmem, size = 0x20000, scoped, tag = 'scratch operand']
  #allocation4 [shape = 'bf16[512,32]{1,0:T(8,128)(2,1)}', space=vmem, size = 0x20000, scoped, tag = 'scratch operand']
  #allocation5 [shape = 'bf16[512,32]{1,0:T(8,128)(2,1)}', space=vmem, size = 0x20000, scoped, tag = 'scratch operand']
  %s0 = inlined_call_operand.vmem [shape: bf16[512,32], index: 0, kind: input, shape index: {}]
  %s1 = inlined_call_operand.vmem [shape: bf16[32,96], index: 1, kind: input, shape index: {}]
  %s2 = inlined_call_operand.vmem [shape: f32[1,96], index: 2, kind: input, shape index: {}]
  %s3 = inlined_call_operand.vmem [shape: bf16[32,32], index: 3, kind: input, shape index: {}]
  %s4 = inlined_call_operand.vmem [shape: f32[1,32], index: 4, kind: input, shape index: {}]
  %s5 = inlined_call_operand.vmem [shape: bf16[256,32], index: 5, kind: input, shape index: {}]
  %s6 = inlined_call_operand.hbm [shape: f32[4,64,256], index: 6, kind: input, shape index: {}]
  %s7 = inlined_call_operand.vmem [shape: f32[512,32], index: 7, kind: output, shape index: {}]
  %s8 = sld [smem:[#allocation0]]
  $region49: #{tpu_custom_call.1} parent=0
    _
  %s10 = ssub.s32 1, %s8
  %s11 = scalar_select 0, %s10, %s8
  $region1: #{tpu_custom_call.1} parent=0
    #allocation6 [shape = 'u8[262144]{0}', space=vmem, size = 0x40000, scoped, tag = 'input window, operand 6, single buffered']
    #allocation7 [shape = 's32[1]{0}', space=sflag, size = 0x4, scoped, tag = 'scoped memory for tpu_custom_call.1']
    %12 = vsyncpa [#allocation7], 0
    // Predicated region
    $region2: #{tpu_custom_call.1} parent=1 // pred_check
      _
    $region3: #{tpu_custom_call.1} parent=1 // pred_check_branch
      %14 = sbr.rel (0) target = $region5
    $region4: #{tpu_custom_call.1} parent=1 // pred_region
      _
    $region5: #{tpu_custom_call.1} parent=1 // pred_fallthru
      _
    // Predicated region
    $region6: #{tpu_custom_call.1} parent=1 // pred_check
      _
    $region7: #{tpu_custom_call.1} parent=1 // pred_check_branch
      %16 = sbr.rel (0) target = $region9
    $region8: #{tpu_custom_call.1} parent=1 // pred_region
      _
    $region9: #{tpu_custom_call.1} parent=1 // pred_fallthru
      _
    // Predicated region
    $region10: #{tpu_custom_call.1} parent=1 // pred_check
      _
    $region11: #{tpu_custom_call.1} parent=1 // pred_check_branch
      %18 = sbr.rel (0) target = $region13
    $region12: #{tpu_custom_call.1} parent=1 // pred_region
      _
    $region13: #{tpu_custom_call.1} parent=1 // pred_fallthru
      _
    // Predicated region
    $region14: #{tpu_custom_call.1} parent=1 // pred_check
      _
    $region15: #{tpu_custom_call.1} parent=1 // pred_check_branch
      %20 = sbr.rel (0) target = $region17
    $region16: #{tpu_custom_call.1} parent=1 // pred_region
      _
    $region17: #{tpu_custom_call.1} parent=1 // pred_fallthru
      _
    // Predicated region
    $region18: #{tpu_custom_call.1} parent=1 // pred_check
      _
    $region19: #{tpu_custom_call.1} parent=1 // pred_check_branch
      %22 = sbr.rel (0) target = $region21
    $region20: #{tpu_custom_call.1} parent=1 // pred_region
      _
    $region21: #{tpu_custom_call.1} parent=1 // pred_fallthru
      _
    // Predicated region
    $region22: #{tpu_custom_call.1} parent=1 // pred_check
      _
    $region23: #{tpu_custom_call.1} parent=1 // pred_check_branch
      %24 = sbr.rel (0) target = $region25
    $region24: #{tpu_custom_call.1} parent=1 // pred_region
      _
    $region25: #{tpu_custom_call.1} parent=1 // pred_fallthru
      _
    // Predicated region
    $region26: #{tpu_custom_call.1} parent=1 // pred_check
      _
    $region27: #{tpu_custom_call.1} parent=1 // pred_check_branch
      %26 = sbr.rel (0) target = $region29
    $region28: #{tpu_custom_call.1} parent=1 // pred_region
      %s28 = ssub.s32 8192, 8192
      %29 = vsyncadd [#allocation7], %s28
      %s30 = sshll.u32 [#allocation6], 4
      %s31 = int_to_ptr.vmem [resolvable:$true] %s30
      %36 = dma.hbm_to_vmem [thread:$0]  %s6, 8192, %s31, [#allocation7], 256, 256, 16
    $region29: #{tpu_custom_call.1} parent=1 // pred_fallthru
      _
    // Predicated region
    $region30: #{tpu_custom_call.1} parent=1 // pred_check
      _
    $region31: #{tpu_custom_call.1} parent=1 // pred_check_branch
      %38 = sbr.rel (0) target = $region33
    $region32: #{tpu_custom_call.1} parent=1 // pred_region
      %39 = dma.done [#allocation7], 8192
    $region33: #{tpu_custom_call.1} parent=1 // pred_fallthru
      _
    %v41 = vld [vmem:[%s0] sm:$0xf]
    %v42 = vld [vmem:[%s0 + $0x4] sm:$0xf]
    %v43 = vld [vmem:[%s0 + $0x8] sm:$0xf]
    %v44 = vld [vmem:[%s0 + $0xc] sm:$0xf]
    %v45 = vld [vmem:[%s0 + $0x10] sm:$0xf]
    %v46 = vld [vmem:[%s0 + $0x14] sm:$0xf]
    %v47 = vld [vmem:[%s0 + $0x18] sm:$0xf]
    %v48 = vld [vmem:[%s0 + $0x1c] sm:$0xf]
    %v49 = vld [vmem:[%s0 + $0x20] sm:$0xf]
    %v50 = vld [vmem:[%s0 + $0x24] sm:$0xf]
    %v51 = vld [vmem:[%s0 + $0x28] sm:$0xf]
    %v52 = vld [vmem:[%s0 + $0x2c] sm:$0xf]
    %v53 = vld [vmem:[%s0 + $0x30] sm:$0xf]
    %v54 = vld [vmem:[%s0 + $0x34] sm:$0xf]
    %v55 = vld [vmem:[%s0 + $0x38] sm:$0xf]
    %v56 = vld [vmem:[%s0 + $0x3c] sm:$0xf]
    %v57 = vld [vmem:[%s0 + $0x40] sm:$0xf]
    %v58 = vld [vmem:[%s0 + $0x44] sm:$0xf]
    %v59 = vld [vmem:[%s0 + $0x48] sm:$0xf]
    %v60 = vld [vmem:[%s0 + $0x4c] sm:$0xf]
    %v61 = vld [vmem:[%s0 + $0x50] sm:$0xf]
    %v62 = vld [vmem:[%s0 + $0x54] sm:$0xf]
    %v63 = vld [vmem:[%s0 + $0x58] sm:$0xf]
    %v64 = vld [vmem:[%s0 + $0x5c] sm:$0xf]
    %v65 = vld [vmem:[%s0 + $0x60] sm:$0xf]
    %v66 = vld [vmem:[%s0 + $0x64] sm:$0xf]
    %v67 = vld [vmem:[%s0 + $0x68] sm:$0xf]
    %v68 = vld [vmem:[%s0 + $0x6c] sm:$0xf]
    %v69 = vld [vmem:[%s0 + $0x70] sm:$0xf]
    %v70 = vld [vmem:[%s0 + $0x74] sm:$0xf]
    %v71 = vld [vmem:[%s0 + $0x78] sm:$0xf]
    %v72 = vld [vmem:[%s0 + $0x7c] sm:$0xf]
    %v73 = vld [vmem:[%s0 + $0x80] sm:$0xf]
    %v74 = vld [vmem:[%s0 + $0x84] sm:$0xf]
    %v75 = vld [vmem:[%s0 + $0x88] sm:$0xf]
    %v76 = vld [vmem:[%s0 + $0x8c] sm:$0xf]
    %v77 = vld [vmem:[%s0 + $0x90] sm:$0xf]
    %v78 = vld [vmem:[%s0 + $0x94] sm:$0xf]
    %v79 = vld [vmem:[%s0 + $0x98] sm:$0xf]
    %v80 = vld [vmem:[%s0 + $0x9c] sm:$0xf]
    %v81 = vld [vmem:[%s0 + $0xa0] sm:$0xf]
    %v82 = vld [vmem:[%s0 + $0xa4] sm:$0xf]
    %v83 = vld [vmem:[%s0 + $0xa8] sm:$0xf]
    %v84 = vld [vmem:[%s0 + $0xac] sm:$0xf]
    %v85 = vld [vmem:[%s0 + $0xb0] sm:$0xf]
    %v86 = vld [vmem:[%s0 + $0xb4] sm:$0xf]
    %v87 = vld [vmem:[%s0 + $0xb8] sm:$0xf]
    %v88 = vld [vmem:[%s0 + $0xbc] sm:$0xf]
    %v89 = vld [vmem:[%s0 + $0xc0] sm:$0xf]
    %v90 = vld [vmem:[%s0 + $0xc4] sm:$0xf]
    %v91 = vld [vmem:[%s0 + $0xc8] sm:$0xf]
    %v92 = vld [vmem:[%s0 + $0xcc] sm:$0xf]
    %v93 = vld [vmem:[%s0 + $0xd0] sm:$0xf]
    %v94 = vld [vmem:[%s0 + $0xd4] sm:$0xf]
    %v95 = vld [vmem:[%s0 + $0xd8] sm:$0xf]
    %v96 = vld [vmem:[%s0 + $0xdc] sm:$0xf]
    %v97 = vld [vmem:[%s0 + $0xe0] sm:$0xf]
    %v98 = vld [vmem:[%s0 + $0xe4] sm:$0xf]
    %v99 = vld [vmem:[%s0 + $0xe8] sm:$0xf]
    %v100 = vld [vmem:[%s0 + $0xec] sm:$0xf]
    %v101 = vld [vmem:[%s0 + $0xf0] sm:$0xf]
    %v102 = vld [vmem:[%s0 + $0xf4] sm:$0xf]
    %v103 = vld [vmem:[%s0 + $0xf8] sm:$0xf]
    %v104 = vld [vmem:[%s0 + $0xfc] sm:$0xf]
    %v105 = vld [vmem:[%s1] sm:$0xf]
    %v106 = vld [vmem:[%s1 + $0x4] sm:$0xf]
    %v107 = vld [vmem:[%s1 + $0x8] sm:$0xf]
    %v108 = vld [vmem:[%s1 + $0xc] sm:$0xf]
    %v109 = vld [vmem:[%s2] sm:$0x1]
    %v111 = vlaneseq
    %v112 = vshrl.u32 %v111, 7
    %v113 = vsub.s32 0, %v112
    %v114 = vrot.slane %v109, %v113
    %v180 = vunpack.c.l.b16 %v41
    %v181 = vunpack.c.l.b16 %v42
    %v182 = vunpack.c.l.b16 %v43
    %v183 = vunpack.c.l.b16 %v44
    %v184 = vunpack.c.l.b16 %v45
    %v185 = vunpack.c.l.b16 %v46
    %v186 = vunpack.c.l.b16 %v47
    %v187 = vunpack.c.l.b16 %v48
    %v188 = vunpack.c.l.b16 %v49
    %v189 = vunpack.c.l.b16 %v50
    %v190 = vunpack.c.l.b16 %v51
    %v191 = vunpack.c.l.b16 %v52
    %v192 = vunpack.c.l.b16 %v53
    %v193 = vunpack.c.l.b16 %v54
    %v194 = vunpack.c.l.b16 %v55
    %v195 = vunpack.c.l.b16 %v56
    %v196 = vunpack.c.l.b16 %v57
    %v197 = vunpack.c.l.b16 %v58
    %v198 = vunpack.c.l.b16 %v59
    %v199 = vunpack.c.l.b16 %v60
    %v200 = vunpack.c.l.b16 %v61
    %v201 = vunpack.c.l.b16 %v62
    %v202 = vunpack.c.l.b16 %v63
    %v203 = vunpack.c.l.b16 %v64
    %v204 = vunpack.c.l.b16 %v65
    %v205 = vunpack.c.l.b16 %v66
    %v206 = vunpack.c.l.b16 %v67
    %v207 = vunpack.c.l.b16 %v68
    %v208 = vunpack.c.l.b16 %v69
    %v209 = vunpack.c.l.b16 %v70
    %v210 = vunpack.c.l.b16 %v71
    %v211 = vunpack.c.l.b16 %v72
    %v212 = vunpack.c.l.b16 %v73
    %v213 = vunpack.c.l.b16 %v74
    %v214 = vunpack.c.l.b16 %v75
    %v215 = vunpack.c.l.b16 %v76
    %v216 = vunpack.c.l.b16 %v77
    %v217 = vunpack.c.l.b16 %v78
    %v218 = vunpack.c.l.b16 %v79
    %v219 = vunpack.c.l.b16 %v80
    %v220 = vunpack.c.l.b16 %v81
    %v221 = vunpack.c.l.b16 %v82
    %v222 = vunpack.c.l.b16 %v83
    %v223 = vunpack.c.l.b16 %v84
    %v224 = vunpack.c.l.b16 %v85
    %v225 = vunpack.c.l.b16 %v86
    %v226 = vunpack.c.l.b16 %v87
    %v227 = vunpack.c.l.b16 %v88
    %v228 = vunpack.c.l.b16 %v89
    %v229 = vunpack.c.l.b16 %v90
    %v230 = vunpack.c.l.b16 %v91
    %v231 = vunpack.c.l.b16 %v92
    %v232 = vunpack.c.l.b16 %v93
    %v233 = vunpack.c.l.b16 %v94
    %v234 = vunpack.c.l.b16 %v95
    %v235 = vunpack.c.l.b16 %v96
    %v236 = vunpack.c.l.b16 %v97
    %v237 = vunpack.c.l.b16 %v98
    %v238 = vunpack.c.l.b16 %v99
    %v239 = vunpack.c.l.b16 %v100
    %v240 = vunpack.c.l.b16 %v101
    %v241 = vunpack.c.l.b16 %v102
    %v242 = vunpack.c.l.b16 %v103
    %v243 = vunpack.c.l.b16 %v104
    %v244 = vpack.c.b16 %v181, %v180
    %v245 = vpack.c.b16 %v183, %v182
    %v246 = vpack.c.b16 %v185, %v184
    %v247 = vpack.c.b16 %v187, %v186
    %v248 = vpack.c.b16 %v189, %v188
    %v249 = vpack.c.b16 %v191, %v190
    %v250 = vpack.c.b16 %v193, %v192
    %v251 = vpack.c.b16 %v195, %v194
    %v252 = vpack.c.b16 %v197, %v196
    %v253 = vpack.c.b16 %v199, %v198
    %v254 = vpack.c.b16 %v201, %v200
    %v255 = vpack.c.b16 %v203, %v202
    %v256 = vpack.c.b16 %v205, %v204
    %v257 = vpack.c.b16 %v207, %v206
    %v258 = vpack.c.b16 %v209, %v208
    %v259 = vpack.c.b16 %v211, %v210
    %v260 = vpack.c.b16 %v213, %v212
    %v261 = vpack.c.b16 %v215, %v214
    %v262 = vpack.c.b16 %v217, %v216
    %v263 = vpack.c.b16 %v219, %v218
    %v264 = vpack.c.b16 %v221, %v220
    %v265 = vpack.c.b16 %v223, %v222
    %v266 = vpack.c.b16 %v225, %v224
    %v267 = vpack.c.b16 %v227, %v226
    %v268 = vpack.c.b16 %v229, %v228
    %v269 = vpack.c.b16 %v231, %v230
    %v270 = vpack.c.b16 %v233, %v232
    %v271 = vpack.c.b16 %v235, %v234
    %v272 = vpack.c.b16 %v237, %v236
    %v273 = vpack.c.b16 %v239, %v238
    %v274 = vpack.c.b16 %v241, %v240
    %v275 = vpack.c.b16 %v243, %v242
    %v280 = vunpack.c.l.b16 %v105
    %v281 = vunpack.c.l.b16 %v106
    %v282 = vunpack.c.l.b16 %v107
    %v283 = vunpack.c.l.b16 %v108
    %v284 = vpack.c.b16 %v281, %v280
    %v285 = vpack.c.b16 %v283, %v282
    %vm288 = vcmask 261120
    %v290 = vsel %vm288, %v244, 0
    %v293 = vsel %vm288, %v245, 0
    %v296 = vsel %vm288, %v246, 0
    %v299 = vsel %vm288, %v247, 0
    %v302 = vsel %vm288, %v248, 0
    %v305 = vsel %vm288, %v249, 0
    %v308 = vsel %vm288, %v250, 0
    %v311 = vsel %vm288, %v251, 0
    %v314 = vsel %vm288, %v252, 0
    %v317 = vsel %vm288, %v253, 0
    %v320 = vsel %vm288, %v254, 0
    %v323 = vsel %vm288, %v255, 0
    %v326 = vsel %vm288, %v256, 0
    %v329 = vsel %vm288, %v257, 0
    %v332 = vsel %vm288, %v258, 0
    %v335 = vsel %vm288, %v259, 0
    %v338 = vsel %vm288, %v260, 0
    %v341 = vsel %vm288, %v261, 0
    %v344 = vsel %vm288, %v262, 0
    %v347 = vsel %vm288, %v263, 0
    %v350 = vsel %vm288, %v264, 0
    %v353 = vsel %vm288, %v265, 0
    %v356 = vsel %vm288, %v266, 0
    %v359 = vsel %vm288, %v267, 0
    %v362 = vsel %vm288, %v268, 0
    %v365 = vsel %vm288, %v269, 0
    %v368 = vsel %vm288, %v270, 0
    %v371 = vsel %vm288, %v271, 0
    %v374 = vsel %vm288, %v272, 0
    %v377 = vsel %vm288, %v273, 0
    %v380 = vsel %vm288, %v274, 0
    %v383 = vsel %vm288, %v275, 0
    %385 = vmatprep.subr.bf16.mxu0 0
    %386 = vmatpush1.bf16.msra.mxu0 0
    %387 = vmatprep.subr.bf16.mxu0 0
    %388 = vmatpush1.bf16.msra.mxu0 0
    %389 = vmatprep.subr.bf16.mxu0 0
    %390 = vmatpush1.bf16.msra.mxu0 0
    %391 = vmatprep.subr.bf16.mxu0 0
    %392 = vmatpush1.bf16.msra.mxu0 0
    %393 = vmatprep.subr.bf16.mxu0 0
    %394 = vmatpush1.bf16.msra.mxu0 0
    %395 = vmatprep.subr.bf16.mxu0 0
    %396 = vmatpush1.bf16.msra.mxu0 0
    %397 = vmatprep.subr.bf16.mxu0 0
    %398 = vmatpush1.bf16.msra.mxu0 %v285
    %399 = vmatprep.subr.bf16.mxu0 0
    %400 = vmatpush1.bf16.msra.mxu0 %v284
    %401 = vmatprep.subr.bf16.mxu0 0
    %402 = vmatpush2.bf16.msra.mxu0 0
    %403 = vmatprep.subr.bf16.mxu0 0
    %404 = vmatpush2.bf16.msra.mxu0 0
    %405 = vmatprep.subr.bf16.mxu0 0
    %406 = vmatpush2.bf16.msra.mxu0 0
    %407 = vmatprep.subr.bf16.mxu0 0
    %408 = vmatpush2.bf16.msra.mxu0 0
    %409 = vmatprep.subr.bf16.mxu0 0
    %410 = vmatpush2.bf16.msra.mxu0 0
    %411 = vmatprep.subr.bf16.mxu0 0
    %412 = vmatpush2.bf16.msra.mxu0 0
    %413 = vmatprep.subr.bf16.mxu0 0
    %414 = vmatpush2.bf16.msra.mxu0 0
    %415 = vmatprep.subr.bf16.mxu0 0
    %416 = vmatpush2.bf16.msra.mxu0 0
    %417 = vmatprep.mubr.bf16.mxu0 0
    %418 = vmatmul.mubr.bf16.gmra.mxu0 %v290
    %v419 = vpop.f32.mrf.mxu0
    %v420 = vadd.f32 %v114, %v419
    %v421 = vpop.f32.mrf.mxu0
    %v422 = vpop.f32.mrf.mxu0
    %v423 = vadd.f32 %v114, %v422
    %v424 = vpop.f32.mrf.mxu0
    %425 = vmatprep.mubr.bf16.mxu0 0
    %426 = vmatmul.mubr.bf16.gmra.mxu0 %v293
    %v427 = vpop.f32.mrf.mxu0
    %v428 = vadd.f32 %v114, %v427
    %v429 = vpop.f32.mrf.mxu0
    %v430 = vpop.f32.mrf.mxu0
    %v431 = vadd.f32 %v114, %v430
    %v432 = vpop.f32.mrf.mxu0
    %433 = vmatprep.mubr.bf16.mxu0 0
    %434 = vmatmul.mubr.bf16.gmra.mxu0 %v296
    %v435 = vpop.f32.mrf.mxu0
    %v436 = vadd.f32 %v114, %v435
    %v437 = vpop.f32.mrf.mxu0
    %v438 = vpop.f32.mrf.mxu0
    %v439 = vadd.f32 %v114, %v438
    %v440 = vpop.f32.mrf.mxu0
    %441 = vmatprep.mubr.bf16.mxu0 0
    %442 = vmatmul.mubr.bf16.gmra.mxu0 %v299
    %v443 = vpop.f32.mrf.mxu0
    %v444 = vadd.f32 %v114, %v443
    %v445 = vpop.f32.mrf.mxu0
    %v446 = vpop.f32.mrf.mxu0
    %v447 = vadd.f32 %v114, %v446
    %v448 = vpop.f32.mrf.mxu0
    %449 = vmatprep.mubr.bf16.mxu0 0
    %450 = vmatmul.mubr.bf16.gmra.mxu0 %v302
    %v451 = vpop.f32.mrf.mxu0
    %v452 = vadd.f32 %v114, %v451
    %v453 = vpop.f32.mrf.mxu0
    %v454 = vpop.f32.mrf.mxu0
    %v455 = vadd.f32 %v114, %v454
    %v456 = vpop.f32.mrf.mxu0
    %457 = vmatprep.mubr.bf16.mxu0 0
    %458 = vmatmul.mubr.bf16.gmra.mxu0 %v305
    %v459 = vpop.f32.mrf.mxu0
    %v460 = vadd.f32 %v114, %v459
    %v461 = vpop.f32.mrf.mxu0
    %v462 = vpop.f32.mrf.mxu0
    %v463 = vadd.f32 %v114, %v462
    %v464 = vpop.f32.mrf.mxu0
    %465 = vmatprep.mubr.bf16.mxu0 0
    %466 = vmatmul.mubr.bf16.gmra.mxu0 %v308
    %v467 = vpop.f32.mrf.mxu0
    %v468 = vadd.f32 %v114, %v467
    %v469 = vpop.f32.mrf.mxu0
    %v470 = vpop.f32.mrf.mxu0
    %v471 = vadd.f32 %v114, %v470
    %v472 = vpop.f32.mrf.mxu0
    %473 = vmatprep.mubr.bf16.mxu0 0
    %474 = vmatmul.mubr.bf16.gmra.mxu0 %v311
    %v475 = vpop.f32.mrf.mxu0
    %v476 = vadd.f32 %v114, %v475
    %v477 = vpop.f32.mrf.mxu0
    %v478 = vpop.f32.mrf.mxu0
    %v479 = vadd.f32 %v114, %v478
    %v480 = vpop.f32.mrf.mxu0
    %481 = vmatprep.mubr.bf16.mxu0 0
    %482 = vmatmul.mubr.bf16.gmra.mxu0 %v314
    %v483 = vpop.f32.mrf.mxu0
    %v484 = vadd.f32 %v114, %v483
    %v485 = vpop.f32.mrf.mxu0
    %v486 = vpop.f32.mrf.mxu0
    %v487 = vadd.f32 %v114, %v486
    %v488 = vpop.f32.mrf.mxu0
    %489 = vmatprep.mubr.bf16.mxu0 0
    %490 = vmatmul.mubr.bf16.gmra.mxu0 %v317
    %v491 = vpop.f32.mrf.mxu0
    %v492 = vadd.f32 %v114, %v491
    %v493 = vpop.f32.mrf.mxu0
    %v494 = vpop.f32.mrf.mxu0
    %v495 = vadd.f32 %v114, %v494
    %v496 = vpop.f32.mrf.mxu0
    %497 = vmatprep.mubr.bf16.mxu0 0
    %498 = vmatmul.mubr.bf16.gmra.mxu0 %v320
    %v499 = vpop.f32.mrf.mxu0
    %v500 = vadd.f32 %v114, %v499
    %v501 = vpop.f32.mrf.mxu0
    %v502 = vpop.f32.mrf.mxu0
    %v503 = vadd.f32 %v114, %v502
    %v504 = vpop.f32.mrf.mxu0
    %505 = vmatprep.mubr.bf16.mxu0 0
    %506 = vmatmul.mubr.bf16.gmra.mxu0 %v323
    %v507 = vpop.f32.mrf.mxu0
    %v508 = vadd.f32 %v114, %v507
    %v509 = vpop.f32.mrf.mxu0
    %v510 = vpop.f32.mrf.mxu0
    %v511 = vadd.f32 %v114, %v510
    %v512 = vpop.f32.mrf.mxu0
    %513 = vmatprep.mubr.bf16.mxu0 0
    %514 = vmatmul.mubr.bf16.gmra.mxu0 %v326
    %v515 = vpop.f32.mrf.mxu0
    %v516 = vadd.f32 %v114, %v515
    %v517 = vpop.f32.mrf.mxu0
    %v518 = vpop.f32.mrf.mxu0
    %v519 = vadd.f32 %v114, %v518
    %v520 = vpop.f32.mrf.mxu0
    %521 = vmatprep.mubr.bf16.mxu0 0
    %522 = vmatmul.mubr.bf16.gmra.mxu0 %v329
    %v523 = vpop.f32.mrf.mxu0
    %v524 = vadd.f32 %v114, %v523
    %v525 = vpop.f32.mrf.mxu0
    %v526 = vpop.f32.mrf.mxu0
    %v527 = vadd.f32 %v114, %v526
    %v528 = vpop.f32.mrf.mxu0
    %529 = vmatprep.mubr.bf16.mxu0 0
    %530 = vmatmul.mubr.bf16.gmra.mxu0 %v332
    %v531 = vpop.f32.mrf.mxu0
    %v532 = vadd.f32 %v114, %v531
    %v533 = vpop.f32.mrf.mxu0
    %v534 = vpop.f32.mrf.mxu0
    %v535 = vadd.f32 %v114, %v534
    %v536 = vpop.f32.mrf.mxu0
    %537 = vmatprep.mubr.bf16.mxu0 0
    %538 = vmatmul.mubr.bf16.gmra.mxu0 %v335
    %v539 = vpop.f32.mrf.mxu0
    %v540 = vadd.f32 %v114, %v539
    %v541 = vpop.f32.mrf.mxu0
    %v542 = vpop.f32.mrf.mxu0
    %v543 = vadd.f32 %v114, %v542
    %v544 = vpop.f32.mrf.mxu0
    %545 = vmatprep.mubr.bf16.mxu0 0
    %546 = vmatmul.mubr.bf16.gmra.mxu0 %v338
    %v547 = vpop.f32.mrf.mxu0
    %v548 = vadd.f32 %v114, %v547
    %v549 = vpop.f32.mrf.mxu0
    %v550 = vpop.f32.mrf.mxu0
    %v551 = vadd.f32 %v114, %v550
    %v552 = vpop.f32.mrf.mxu0
    %553 = vmatprep.mubr.bf16.mxu0 0
    %554 = vmatmul.mubr.bf16.gmra.mxu0 %v341
    %v555 = vpop.f32.mrf.mxu0
    %v556 = vadd.f32 %v114, %v555
    %v557 = vpop.f32.mrf.mxu0
    %v558 = vpop.f32.mrf.mxu0
    %v559 = vadd.f32 %v114, %v558
    %v560 = vpop.f32.mrf.mxu0
    %561 = vmatprep.mubr.bf16.mxu0 0
    %562 = vmatmul.mubr.bf16.gmra.mxu0 %v344
    %v563 = vpop.f32.mrf.mxu0
    %v564 = vadd.f32 %v114, %v563
    %v565 = vpop.f32.mrf.mxu0
    %v566 = vpop.f32.mrf.mxu0
    %v567 = vadd.f32 %v114, %v566
    %v568 = vpop.f32.mrf.mxu0
    %569 = vmatprep.mubr.bf16.mxu0 0
    %570 = vmatmul.mubr.bf16.gmra.mxu0 %v347
    %v571 = vpop.f32.mrf.mxu0
    %v572 = vadd.f32 %v114, %v571
    %v573 = vpop.f32.mrf.mxu0
    %v574 = vpop.f32.mrf.mxu0
    %v575 = vadd.f32 %v114, %v574
    %v576 = vpop.f32.mrf.mxu0
    %577 = vmatprep.mubr.bf16.mxu0 0
    %578 = vmatmul.mubr.bf16.gmra.mxu0 %v350
    %v579 = vpop.f32.mrf.mxu0
    %v580 = vadd.f32 %v114, %v579
    %v581 = vpop.f32.mrf.mxu0
    %v582 = vpop.f32.mrf.mxu0
    %v583 = vadd.f32 %v114, %v582
    %v584 = vpop.f32.mrf.mxu0
    %585 = vmatprep.mubr.bf16.mxu0 0
    %586 = vmatmul.mubr.bf16.gmra.mxu0 %v353
    %v587 = vpop.f32.mrf.mxu0
    %v588 = vadd.f32 %v114, %v587
    %v589 = vpop.f32.mrf.mxu0
    %v590 = vpop.f32.mrf.mxu0
    %v591 = vadd.f32 %v114, %v590
    %v592 = vpop.f32.mrf.mxu0
    %593 = vmatprep.mubr.bf16.mxu0 0
    %594 = vmatmul.mubr.bf16.gmra.mxu0 %v356
    %v595 = vpop.f32.mrf.mxu0
    %v596 = vadd.f32 %v114, %v595
    %v597 = vpop.f32.mrf.mxu0
    %v598 = vpop.f32.mrf.mxu0
    %v599 = vadd.f32 %v114, %v598
    %v600 = vpop.f32.mrf.mxu0
    %601 = vmatprep.mubr.bf16.mxu0 0
    %602 = vmatmul.mubr.bf16.gmra.mxu0 %v359
    %v603 = vpop.f32.mrf.mxu0
    %v604 = vadd.f32 %v114, %v603
    %v605 = vpop.f32.mrf.mxu0
    %v606 = vpop.f32.mrf.mxu0
    %v607 = vadd.f32 %v114, %v606
    %v608 = vpop.f32.mrf.mxu0
    %609 = vmatprep.mubr.bf16.mxu0 0
    %610 = vmatmul.mubr.bf16.gmra.mxu0 %v362
    %v611 = vpop.f32.mrf.mxu0
    %v612 = vadd.f32 %v114, %v611
    %v613 = vpop.f32.mrf.mxu0
    %v614 = vpop.f32.mrf.mxu0
    %v615 = vadd.f32 %v114, %v614
    %v616 = vpop.f32.mrf.mxu0
    %617 = vmatprep.mubr.bf16.mxu0 0
    %618 = vmatmul.mubr.bf16.gmra.mxu0 %v365
    %v619 = vpop.f32.mrf.mxu0
    %v620 = vadd.f32 %v114, %v619
    %v621 = vpop.f32.mrf.mxu0
    %v622 = vpop.f32.mrf.mxu0
    %v623 = vadd.f32 %v114, %v622
    %v624 = vpop.f32.mrf.mxu0
    %625 = vmatprep.mubr.bf16.mxu0 0
    %626 = vmatmul.mubr.bf16.gmra.mxu0 %v368
    %v627 = vpop.f32.mrf.mxu0
    %v628 = vadd.f32 %v114, %v627
    %v629 = vpop.f32.mrf.mxu0
    %v630 = vpop.f32.mrf.mxu0
    %v631 = vadd.f32 %v114, %v630
    %v632 = vpop.f32.mrf.mxu0
    %633 = vmatprep.mubr.bf16.mxu0 0
    %634 = vmatmul.mubr.bf16.gmra.mxu0 %v371
    %v635 = vpop.f32.mrf.mxu0
    %v636 = vadd.f32 %v114, %v635
    %v637 = vpop.f32.mrf.mxu0
    %v638 = vpop.f32.mrf.mxu0
    %v639 = vadd.f32 %v114, %v638
    %v640 = vpop.f32.mrf.mxu0
    %641 = vmatprep.mubr.bf16.mxu0 0
    %642 = vmatmul.mubr.bf16.gmra.mxu0 %v374
    %v643 = vpop.f32.mrf.mxu0
    %v644 = vadd.f32 %v114, %v643
    %v645 = vpop.f32.mrf.mxu0
    %v646 = vpop.f32.mrf.mxu0
    %v647 = vadd.f32 %v114, %v646
    %v648 = vpop.f32.mrf.mxu0
    %649 = vmatprep.mubr.bf16.mxu0 0
    %650 = vmatmul.mubr.bf16.gmra.mxu0 %v377
    %v651 = vpop.f32.mrf.mxu0
    %v652 = vadd.f32 %v114, %v651
    %v653 = vpop.f32.mrf.mxu0
    %v654 = vpop.f32.mrf.mxu0
    %v655 = vadd.f32 %v114, %v654
    %v656 = vpop.f32.mrf.mxu0
    %657 = vmatprep.mubr.bf16.mxu0 0
    %658 = vmatmul.mubr.bf16.gmra.mxu0 %v380
    %v659 = vpop.f32.mrf.mxu0
    %v660 = vadd.f32 %v114, %v659
    %v661 = vpop.f32.mrf.mxu0
    %v662 = vpop.f32.mrf.mxu0
    %v663 = vadd.f32 %v114, %v662
    %v664 = vpop.f32.mrf.mxu0
    %665 = vmatprep.mubr.bf16.mxu0 0
    %666 = vmatmul.mubr.bf16.gmra.mxu0 %v383
    %v667 = vpop.f32.mrf.mxu0
    %v668 = vadd.f32 %v114, %v667
    %v669 = vpop.f32.mrf.mxu0
    %v670 = vpop.f32.mrf.mxu0
    %v671 = vadd.f32 %v114, %v670
    %v672 = vpop.f32.mrf.mxu0
    %673 = vdwg.mxu0
    %v674 = vpack.c.bf16 %v423, %v420
    %v675 = vpack.c.bf16 %v431, %v428
    %v676 = vpack.c.bf16 %v439, %v436
    %v677 = vpack.c.bf16 %v447, %v444
    %v678 = vpack.c.bf16 %v455, %v452
    %v679 = vpack.c.bf16 %v463, %v460
    %v680 = vpack.c.bf16 %v471, %v468
    %v681 = vpack.c.bf16 %v479, %v476
    %v682 = vpack.c.bf16 %v487, %v484
    %v683 = vpack.c.bf16 %v495, %v492
    %v684 = vpack.c.bf16 %v503, %v500
    %v685 = vpack.c.bf16 %v511, %v508
    %v686 = vpack.c.bf16 %v519, %v516
    %v687 = vpack.c.bf16 %v527, %v524
    %v688 = vpack.c.bf16 %v535, %v532
    %v689 = vpack.c.bf16 %v543, %v540
    %v690 = vpack.c.bf16 %v551, %v548
    %v691 = vpack.c.bf16 %v559, %v556
    %v692 = vpack.c.bf16 %v567, %v564
    %v693 = vpack.c.bf16 %v575, %v572
    %v694 = vpack.c.bf16 %v583, %v580
    %v695 = vpack.c.bf16 %v591, %v588
    %v696 = vpack.c.bf16 %v599, %v596
    %v697 = vpack.c.bf16 %v607, %v604
    %v698 = vpack.c.bf16 %v615, %v612
    %v699 = vpack.c.bf16 %v623, %v620
    %v700 = vpack.c.bf16 %v631, %v628
    %v701 = vpack.c.bf16 %v639, %v636
    %v702 = vpack.c.bf16 %v647, %v644
    %v703 = vpack.c.bf16 %v655, %v652
    %v704 = vpack.c.bf16 %v663, %v660
    %v705 = vpack.c.bf16 %v671, %v668
    %v738 = vunpack.c.l.b16 %v674
    %v739 = vunpack.c.h.b16 %v674
    %v740 = vunpack.c.l.b16 %v675
    %v741 = vunpack.c.h.b16 %v675
    %v742 = vunpack.c.l.b16 %v676
    %v743 = vunpack.c.h.b16 %v676
    %v744 = vunpack.c.l.b16 %v677
    %v745 = vunpack.c.h.b16 %v677
    %v746 = vunpack.c.l.b16 %v678
    %v747 = vunpack.c.h.b16 %v678
    %v748 = vunpack.c.l.b16 %v679
    %v749 = vunpack.c.h.b16 %v679
    %v750 = vunpack.c.l.b16 %v680
    %v751 = vunpack.c.h.b16 %v680
    %v752 = vunpack.c.l.b16 %v681
    %v753 = vunpack.c.h.b16 %v681
    %v754 = vunpack.c.l.b16 %v682
    %v755 = vunpack.c.h.b16 %v682
    %v756 = vunpack.c.l.b16 %v683
    %v757 = vunpack.c.h.b16 %v683
    %v758 = vunpack.c.l.b16 %v684
    %v759 = vunpack.c.h.b16 %v684
    %v760 = vunpack.c.l.b16 %v685
    %v761 = vunpack.c.h.b16 %v685
    %v762 = vunpack.c.l.b16 %v686
    %v763 = vunpack.c.h.b16 %v686
    %v764 = vunpack.c.l.b16 %v687
    %v765 = vunpack.c.h.b16 %v687
    %v766 = vunpack.c.l.b16 %v688
    %v767 = vunpack.c.h.b16 %v688
    %v768 = vunpack.c.l.b16 %v689
    %v769 = vunpack.c.h.b16 %v689
    %v770 = vunpack.c.l.b16 %v690
    %v771 = vunpack.c.h.b16 %v690
    %v772 = vunpack.c.l.b16 %v691
    %v773 = vunpack.c.h.b16 %v691
    %v774 = vunpack.c.l.b16 %v692
    %v775 = vunpack.c.h.b16 %v692
    %v776 = vunpack.c.l.b16 %v693
    %v777 = vunpack.c.h.b16 %v693
    %v778 = vunpack.c.l.b16 %v694
    %v779 = vunpack.c.h.b16 %v694
    %v780 = vunpack.c.l.b16 %v695
    %v781 = vunpack.c.h.b16 %v695
    %v782 = vunpack.c.l.b16 %v696
    %v783 = vunpack.c.h.b16 %v696
    %v784 = vunpack.c.l.b16 %v697
    %v785 = vunpack.c.h.b16 %v697
    %v786 = vunpack.c.l.b16 %v698
    %v787 = vunpack.c.h.b16 %v698
    %v788 = vunpack.c.l.b16 %v699
    %v789 = vunpack.c.h.b16 %v699
    %v790 = vunpack.c.l.b16 %v700
    %v791 = vunpack.c.h.b16 %v700
    %v792 = vunpack.c.l.b16 %v701
    %v793 = vunpack.c.h.b16 %v701
    %v794 = vunpack.c.l.b16 %v702
    %v795 = vunpack.c.h.b16 %v702
    %v796 = vunpack.c.l.b16 %v703
    %v797 = vunpack.c.h.b16 %v703
    %v798 = vunpack.c.l.b16 %v704
    %v799 = vunpack.c.h.b16 %v704
    %v800 = vunpack.c.l.b16 %v705
    %v801 = vunpack.c.h.b16 %v705
    %v802 = vpack.c.b16 %v738, %v738
    %v803 = vpack.c.b16 %v739, %v739
    %v804 = vpack.c.b16 %v740, %v740
    %v805 = vpack.c.b16 %v741, %v741
    %v806 = vpack.c.b16 %v742, %v742
    %v807 = vpack.c.b16 %v743, %v743
    %v808 = vpack.c.b16 %v744, %v744
    %v809 = vpack.c.b16 %v745, %v745
    %v810 = vpack.c.b16 %v746, %v746
    %v811 = vpack.c.b16 %v747, %v747
    %v812 = vpack.c.b16 %v748, %v748
    %v813 = vpack.c.b16 %v749, %v749
    %v814 = vpack.c.b16 %v750, %v750
    %v815 = vpack.c.b16 %v751, %v751
    %v816 = vpack.c.b16 %v752, %v752
    %v817 = vpack.c.b16 %v753, %v753
    %v818 = vpack.c.b16 %v754, %v754
    %v819 = vpack.c.b16 %v755, %v755
    %v820 = vpack.c.b16 %v756, %v756
    %v821 = vpack.c.b16 %v757, %v757
    %v822 = vpack.c.b16 %v758, %v758
    %v823 = vpack.c.b16 %v759, %v759
    %v824 = vpack.c.b16 %v760, %v760
    %v825 = vpack.c.b16 %v761, %v761
    %v826 = vpack.c.b16 %v762, %v762
    %v827 = vpack.c.b16 %v763, %v763
    %v828 = vpack.c.b16 %v764, %v764
    %v829 = vpack.c.b16 %v765, %v765
    %v830 = vpack.c.b16 %v766, %v766
    %v831 = vpack.c.b16 %v767, %v767
    %v832 = vpack.c.b16 %v768, %v768
    %v833 = vpack.c.b16 %v769, %v769
    %v834 = vpack.c.b16 %v770, %v770
    %v835 = vpack.c.b16 %v771, %v771
    %v836 = vpack.c.b16 %v772, %v772
    %v837 = vpack.c.b16 %v773, %v773
    %v838 = vpack.c.b16 %v774, %v774
    %v839 = vpack.c.b16 %v775, %v775
    %v840 = vpack.c.b16 %v776, %v776
    %v841 = vpack.c.b16 %v777, %v777
    %v842 = vpack.c.b16 %v778, %v778
    %v843 = vpack.c.b16 %v779, %v779
    %v844 = vpack.c.b16 %v780, %v780
    %v845 = vpack.c.b16 %v781, %v781
    %v846 = vpack.c.b16 %v782, %v782
    %v847 = vpack.c.b16 %v783, %v783
    %v848 = vpack.c.b16 %v784, %v784
    %v849 = vpack.c.b16 %v785, %v785
    %v850 = vpack.c.b16 %v786, %v786
    %v851 = vpack.c.b16 %v787, %v787
    %v852 = vpack.c.b16 %v788, %v788
    %v853 = vpack.c.b16 %v789, %v789
    %v854 = vpack.c.b16 %v790, %v790
    %v855 = vpack.c.b16 %v791, %v791
    %v856 = vpack.c.b16 %v792, %v792
    %v857 = vpack.c.b16 %v793, %v793
    %v858 = vpack.c.b16 %v794, %v794
    %v859 = vpack.c.b16 %v795, %v795
    %v860 = vpack.c.b16 %v796, %v796
    %v861 = vpack.c.b16 %v797, %v797
    %v862 = vpack.c.b16 %v798, %v798
    %v863 = vpack.c.b16 %v799, %v799
    %v864 = vpack.c.b16 %v800, %v800
    %v865 = vpack.c.b16 %v801, %v801
    %vm930 = vcmask 257024
    %931 = vst.msk [vmem:[#allocation2] sm:$0xf] %vm930, %v802
    %932 = vst.msk [vmem:[#allocation2 + $0x4] sm:$0xf] %vm930, %v803
    %933 = vst.msk [vmem:[#allocation2 + $0x8] sm:$0xf] %vm930, %v804
    %934 = vst.msk [vmem:[#allocation2 + $0xc] sm:$0xf] %vm930, %v805
    %935 = vst.msk [vmem:[#allocation2 + $0x10] sm:$0xf] %vm930, %v806
    %936 = vst.msk [vmem:[#allocation2 + $0x14] sm:$0xf] %vm930, %v807
    %937 = vst.msk [vmem:[#allocation2 + $0x18] sm:$0xf] %vm930, %v808
    %938 = vst.msk [vmem:[#allocation2 + $0x1c] sm:$0xf] %vm930, %v809
    %939 = vst.msk [vmem:[#allocation2 + $0x20] sm:$0xf] %vm930, %v810
    %940 = vst.msk [vmem:[#allocation2 + $0x24] sm:$0xf] %vm930, %v811
    %941 = vst.msk [vmem:[#allocation2 + $0x28] sm:$0xf] %vm930, %v812
    %942 = vst.msk [vmem:[#allocation2 + $0x2c] sm:$0xf] %vm930, %v813
    %943 = vst.msk [vmem:[#allocation2 + $0x30] sm:$0xf] %vm930, %v814
    %944 = vst.msk [vmem:[#allocation2 + $0x34] sm:$0xf] %vm930, %v815
    %945 = vst.msk [vmem:[#allocation2 + $0x38] sm:$0xf] %vm930, %v816
    %946 = vst.msk [vmem:[#allocation2 + $0x3c] sm:$0xf] %vm930, %v817
    %947 = vst.msk [vmem:[#allocation2 + $0x40] sm:$0xf] %vm930, %v818
    %948 = vst.msk [vmem:[#allocation2 + $0x44] sm:$0xf] %vm930, %v819
    %949 = vst.msk [vmem:[#allocation2 + $0x48] sm:$0xf] %vm930, %v820
    %950 = vst.msk [vmem:[#allocation2 + $0x4c] sm:$0xf] %vm930, %v821
    %951 = vst.msk [vmem:[#allocation2 + $0x50] sm:$0xf] %vm930, %v822
    %952 = vst.msk [vmem:[#allocation2 + $0x54] sm:$0xf] %vm930, %v823
    %953 = vst.msk [vmem:[#allocation2 + $0x58] sm:$0xf] %vm930, %v824
    %954 = vst.msk [vmem:[#allocation2 + $0x5c] sm:$0xf] %vm930, %v825
    %955 = vst.msk [vmem:[#allocation2 + $0x60] sm:$0xf] %vm930, %v826
    %956 = vst.msk [vmem:[#allocation2 + $0x64] sm:$0xf] %vm930, %v827
    %957 = vst.msk [vmem:[#allocation2 + $0x68] sm:$0xf] %vm930, %v828
    %958 = vst.msk [vmem:[#allocation2 + $0x6c] sm:$0xf] %vm930, %v829
    %959 = vst.msk [vmem:[#allocation2 + $0x70] sm:$0xf] %vm930, %v830
    %960 = vst.msk [vmem:[#allocation2 + $0x74] sm:$0xf] %vm930, %v831
    %961 = vst.msk [vmem:[#allocation2 + $0x78] sm:$0xf] %vm930, %v832
    %962 = vst.msk [vmem:[#allocation2 + $0x7c] sm:$0xf] %vm930, %v833
    %963 = vst.msk [vmem:[#allocation2 + $0x80] sm:$0xf] %vm930, %v834
    %964 = vst.msk [vmem:[#allocation2 + $0x84] sm:$0xf] %vm930, %v835
    %965 = vst.msk [vmem:[#allocation2 + $0x88] sm:$0xf] %vm930, %v836
    %966 = vst.msk [vmem:[#allocation2 + $0x8c] sm:$0xf] %vm930, %v837
    %967 = vst.msk [vmem:[#allocation2 + $0x90] sm:$0xf] %vm930, %v838
    %968 = vst.msk [vmem:[#allocation2 + $0x94] sm:$0xf] %vm930, %v839
    %969 = vst.msk [vmem:[#allocation2 + $0x98] sm:$0xf] %vm930, %v840
    %970 = vst.msk [vmem:[#allocation2 + $0x9c] sm:$0xf] %vm930, %v841
    %971 = vst.msk [vmem:[#allocation2 + $0xa0] sm:$0xf] %vm930, %v842
    %972 = vst.msk [vmem:[#allocation2 + $0xa4] sm:$0xf] %vm930, %v843
    %973 = vst.msk [vmem:[#allocation2 + $0xa8] sm:$0xf] %vm930, %v844
    %974 = vst.msk [vmem:[#allocation2 + $0xac] sm:$0xf] %vm930, %v845
    %975 = vst.msk [vmem:[#allocation2 + $0xb0] sm:$0xf] %vm930, %v846
    %976 = vst.msk [vmem:[#allocation2 + $0xb4] sm:$0xf] %vm930, %v847
    %977 = vst.msk [vmem:[#allocation2 + $0xb8] sm:$0xf] %vm930, %v848
    %978 = vst.msk [vmem:[#allocation2 + $0xbc] sm:$0xf] %vm930, %v849
    %979 = vst.msk [vmem:[#allocation2 + $0xc0] sm:$0xf] %vm930, %v850
    %980 = vst.msk [vmem:[#allocation2 + $0xc4] sm:$0xf] %vm930, %v851
    %981 = vst.msk [vmem:[#allocation2 + $0xc8] sm:$0xf] %vm930, %v852
    %982 = vst.msk [vmem:[#allocation2 + $0xcc] sm:$0xf] %vm930, %v853
    %983 = vst.msk [vmem:[#allocation2 + $0xd0] sm:$0xf] %vm930, %v854
    %984 = vst.msk [vmem:[#allocation2 + $0xd4] sm:$0xf] %vm930, %v855
    %985 = vst.msk [vmem:[#allocation2 + $0xd8] sm:$0xf] %vm930, %v856
    %986 = vst.msk [vmem:[#allocation2 + $0xdc] sm:$0xf] %vm930, %v857
    %987 = vst.msk [vmem:[#allocation2 + $0xe0] sm:$0xf] %vm930, %v858
    %988 = vst.msk [vmem:[#allocation2 + $0xe4] sm:$0xf] %vm930, %v859
    %989 = vst.msk [vmem:[#allocation2 + $0xe8] sm:$0xf] %vm930, %v860
    %990 = vst.msk [vmem:[#allocation2 + $0xec] sm:$0xf] %vm930, %v861
    %991 = vst.msk [vmem:[#allocation2 + $0xf0] sm:$0xf] %vm930, %v862
    %992 = vst.msk [vmem:[#allocation2 + $0xf4] sm:$0xf] %vm930, %v863
    %993 = vst.msk [vmem:[#allocation2 + $0xf8] sm:$0xf] %vm930, %v864
    %994 = vst.msk [vmem:[#allocation2 + $0xfc] sm:$0xf] %vm930, %v865
    %995 = vrot.lane.b32.xlu0 %v802, 96
    %v996 = vpop.permute.xlu0 %995
    %997 = vrot.lane.b32.xlu0 %v803, 96
    %v998 = vpop.permute.xlu0 %997
    %999 = vrot.lane.b32.xlu0 %v804, 96
    %v1000 = vpop.permute.xlu0 %999
    %1001 = vrot.lane.b32.xlu0 %v805, 96
    %v1002 = vpop.permute.xlu0 %1001
    %1003 = vrot.lane.b32.xlu0 %v806, 96
    %v1004 = vpop.permute.xlu0 %1003
    %1005 = vrot.lane.b32.xlu0 %v807, 96
    %v1006 = vpop.permute.xlu0 %1005
    %1007 = vrot.lane.b32.xlu0 %v808, 96
    %v1008 = vpop.permute.xlu0 %1007
    %1009 = vrot.lane.b32.xlu0 %v809, 96
    %v1010 = vpop.permute.xlu0 %1009
    %1011 = vrot.lane.b32.xlu0 %v810, 96
    %v1012 = vpop.permute.xlu0 %1011
    %1013 = vrot.lane.b32.xlu0 %v811, 96
    %v1014 = vpop.permute.xlu0 %1013
    %1015 = vrot.lane.b32.xlu0 %v812, 96
    %v1016 = vpop.permute.xlu0 %1015
    %1017 = vrot.lane.b32.xlu0 %v813, 96
    %v1018 = vpop.permute.xlu0 %1017
    %1019 = vrot.lane.b32.xlu0 %v814, 96
    %v1020 = vpop.permute.xlu0 %1019
    %1021 = vrot.lane.b32.xlu0 %v815, 96
    %v1022 = vpop.permute.xlu0 %1021
    %1023 = vrot.lane.b32.xlu0 %v816, 96
    %v1024 = vpop.permute.xlu0 %1023
    %1025 = vrot.lane.b32.xlu0 %v817, 96
    %v1026 = vpop.permute.xlu0 %1025
    %1027 = vrot.lane.b32.xlu0 %v818, 96
    %v1028 = vpop.permute.xlu0 %1027
    %1029 = vrot.lane.b32.xlu0 %v819, 96
    %v1030 = vpop.permute.xlu0 %1029
    %1031 = vrot.lane.b32.xlu0 %v820, 96
    %v1032 = vpop.permute.xlu0 %1031
    %1033 = vrot.lane.b32.xlu0 %v821, 96
    %v1034 = vpop.permute.xlu0 %1033
    %1035 = vrot.lane.b32.xlu0 %v822, 96
    %v1036 = vpop.permute.xlu0 %1035
    %1037 = vrot.lane.b32.xlu0 %v823, 96
    %v1038 = vpop.permute.xlu0 %1037
    %1039 = vrot.lane.b32.xlu0 %v824, 96
    %v1040 = vpop.permute.xlu0 %1039
    %1041 = vrot.lane.b32.xlu0 %v825, 96
    %v1042 = vpop.permute.xlu0 %1041
    %1043 = vrot.lane.b32.xlu0 %v826, 96
    %v1044 = vpop.permute.xlu0 %1043
    %1045 = vrot.lane.b32.xlu0 %v827, 96
    %v1046 = vpop.permute.xlu0 %1045
    %1047 = vrot.lane.b32.xlu0 %v828, 96
    %v1048 = vpop.permute.xlu0 %1047
    %1049 = vrot.lane.b32.xlu0 %v829, 96
    %v1050 = vpop.permute.xlu0 %1049
    %1051 = vrot.lane.b32.xlu0 %v830, 96
    %v1052 = vpop.permute.xlu0 %1051
    %1053 = vrot.lane.b32.xlu0 %v831, 96
    %v1054 = vpop.permute.xlu0 %1053
    %1055 = vrot.lane.b32.xlu0 %v832, 96
    %v1056 = vpop.permute.xlu0 %1055
    %1057 = vrot.lane.b32.xlu0 %v833, 96
    %v1058 = vpop.permute.xlu0 %1057
    %1059 = vrot.lane.b32.xlu0 %v834, 96
    %v1060 = vpop.permute.xlu0 %1059
    %1061 = vrot.lane.b32.xlu0 %v835, 96
    %v1062 = vpop.permute.xlu0 %1061
    %1063 = vrot.lane.b32.xlu0 %v836, 96
    %v1064 = vpop.permute.xlu0 %1063
    %1065 = vrot.lane.b32.xlu0 %v837, 96
    %v1066 = vpop.permute.xlu0 %1065
    %1067 = vrot.lane.b32.xlu0 %v838, 96
    %v1068 = vpop.permute.xlu0 %1067
    %1069 = vrot.lane.b32.xlu0 %v839, 96
    %v1070 = vpop.permute.xlu0 %1069
    %1071 = vrot.lane.b32.xlu0 %v840, 96
    %v1072 = vpop.permute.xlu0 %1071
    %1073 = vrot.lane.b32.xlu0 %v841, 96
    %v1074 = vpop.permute.xlu0 %1073
    %1075 = vrot.lane.b32.xlu0 %v842, 96
    %v1076 = vpop.permute.xlu0 %1075
    %1077 = vrot.lane.b32.xlu0 %v843, 96
    %v1078 = vpop.permute.xlu0 %1077
    %1079 = vrot.lane.b32.xlu0 %v844, 96
    %v1080 = vpop.permute.xlu0 %1079
    %1081 = vrot.lane.b32.xlu0 %v845, 96
    %v1082 = vpop.permute.xlu0 %1081
    %1083 = vrot.lane.b32.xlu0 %v846, 96
    %v1084 = vpop.permute.xlu0 %1083
    %1085 = vrot.lane.b32.xlu0 %v847, 96
    %v1086 = vpop.permute.xlu0 %1085
    %1087 = vrot.lane.b32.xlu0 %v848, 96
    %v1088 = vpop.permute.xlu0 %1087
    %1089 = vrot.lane.b32.xlu0 %v849, 96
    %v1090 = vpop.permute.xlu0 %1089
    %1091 = vrot.lane.b32.xlu0 %v850, 96
    %v1092 = vpop.permute.xlu0 %1091
    %1093 = vrot.lane.b32.xlu0 %v851, 96
    %v1094 = vpop.permute.xlu0 %1093
    %1095 = vrot.lane.b32.xlu0 %v852, 96
    %v1096 = vpop.permute.xlu0 %1095
    %1097 = vrot.lane.b32.xlu0 %v853, 96
    %v1098 = vpop.permute.xlu0 %1097
    %1099 = vrot.lane.b32.xlu0 %v854, 96
    %v1100 = vpop.permute.xlu0 %1099
    %1101 = vrot.lane.b32.xlu0 %v855, 96
    %v1102 = vpop.permute.xlu0 %1101
    %1103 = vrot.lane.b32.xlu0 %v856, 96
    %v1104 = vpop.permute.xlu0 %1103
    %1105 = vrot.lane.b32.xlu0 %v857, 96
    %v1106 = vpop.permute.xlu0 %1105
    %1107 = vrot.lane.b32.xlu0 %v858, 96
    %v1108 = vpop.permute.xlu0 %1107
    %1109 = vrot.lane.b32.xlu0 %v859, 96
    %v1110 = vpop.permute.xlu0 %1109
    %1111 = vrot.lane.b32.xlu0 %v860, 96
    %v1112 = vpop.permute.xlu0 %1111
    %1113 = vrot.lane.b32.xlu0 %v861, 96
    %v1114 = vpop.permute.xlu0 %1113
    %1115 = vrot.lane.b32.xlu0 %v862, 96
    %v1116 = vpop.permute.xlu0 %1115
    %1117 = vrot.lane.b32.xlu0 %v863, 96
    %v1118 = vpop.permute.xlu0 %1117
    %1119 = vrot.lane.b32.xlu0 %v864, 96
    %v1120 = vpop.permute.xlu0 %1119
    %1121 = vrot.lane.b32.xlu0 %v865, 96
    %v1122 = vpop.permute.xlu0 %1121
    %1187 = vst.msk [vmem:[#allocation3] sm:$0xf] %vm930, %v996
    %1188 = vst.msk [vmem:[#allocation3 + $0x4] sm:$0xf] %vm930, %v998
    %1189 = vst.msk [vmem:[#allocation3 + $0x8] sm:$0xf] %vm930, %v1000
    %1190 = vst.msk [vmem:[#allocation3 + $0xc] sm:$0xf] %vm930, %v1002
    %1191 = vst.msk [vmem:[#allocation3 + $0x10] sm:$0xf] %vm930, %v1004
    %1192 = vst.msk [vmem:[#allocation3 + $0x14] sm:$0xf] %vm930, %v1006
    %1193 = vst.msk [vmem:[#allocation3 + $0x18] sm:$0xf] %vm930, %v1008
    %1194 = vst.msk [vmem:[#allocation3 + $0x1c] sm:$0xf] %vm930, %v1010
    %1195 = vst.msk [vmem:[#allocation3 + $0x20] sm:$0xf] %vm930, %v1012
    %1196 = vst.msk [vmem:[#allocation3 + $0x24] sm:$0xf] %vm930, %v1014
    %1197 = vst.msk [vmem:[#allocation3 + $0x28] sm:$0xf] %vm930, %v1016
    %1198 = vst.msk [vmem:[#allocation3 + $0x2c] sm:$0xf] %vm930, %v1018
    %1199 = vst.msk [vmem:[#allocation3 + $0x30] sm:$0xf] %vm930, %v1020
    %1200 = vst.msk [vmem:[#allocation3 + $0x34] sm:$0xf] %vm930, %v1022
    %1201 = vst.msk [vmem:[#allocation3 + $0x38] sm:$0xf] %vm930, %v1024
    %1202 = vst.msk [vmem:[#allocation3 + $0x3c] sm:$0xf] %vm930, %v1026
    %1203 = vst.msk [vmem:[#allocation3 + $0x40] sm:$0xf] %vm930, %v1028
    %1204 = vst.msk [vmem:[#allocation3 + $0x44] sm:$0xf] %vm930, %v1030
    %1205 = vst.msk [vmem:[#allocation3 + $0x48] sm:$0xf] %vm930, %v1032
    %1206 = vst.msk [vmem:[#allocation3 + $0x4c] sm:$0xf] %vm930, %v1034
    %1207 = vst.msk [vmem:[#allocation3 + $0x50] sm:$0xf] %vm930, %v1036
    %1208 = vst.msk [vmem:[#allocation3 + $0x54] sm:$0xf] %vm930, %v1038
    %1209 = vst.msk [vmem:[#allocation3 + $0x58] sm:$0xf] %vm930, %v1040
    %1210 = vst.msk [vmem:[#allocation3 + $0x5c] sm:$0xf] %vm930, %v1042
    %1211 = vst.msk [vmem:[#allocation3 + $0x60] sm:$0xf] %vm930, %v1044
    %1212 = vst.msk [vmem:[#allocation3 + $0x64] sm:$0xf] %vm930, %v1046
    %1213 = vst.msk [vmem:[#allocation3 + $0x68] sm:$0xf] %vm930, %v1048
    %1214 = vst.msk [vmem:[#allocation3 + $0x6c] sm:$0xf] %vm930, %v1050
    %1215 = vst.msk [vmem:[#allocation3 + $0x70] sm:$0xf] %vm930, %v1052
    %1216 = vst.msk [vmem:[#allocation3 + $0x74] sm:$0xf] %vm930, %v1054
    %1217 = vst.msk [vmem:[#allocation3 + $0x78] sm:$0xf] %vm930, %v1056
    %1218 = vst.msk [vmem:[#allocation3 + $0x7c] sm:$0xf] %vm930, %v1058
    %1219 = vst.msk [vmem:[#allocation3 + $0x80] sm:$0xf] %vm930, %v1060
    %1220 = vst.msk [vmem:[#allocation3 + $0x84] sm:$0xf] %vm930, %v1062
    %1221 = vst.msk [vmem:[#allocation3 + $0x88] sm:$0xf] %vm930, %v1064
    %1222 = vst.msk [vmem:[#allocation3 + $0x8c] sm:$0xf] %vm930, %v1066
    %1223 = vst.msk [vmem:[#allocation3 + $0x90] sm:$0xf] %vm930, %v1068
    %1224 = vst.msk [vmem:[#allocation3 + $0x94] sm:$0xf] %vm930, %v1070
    %1225 = vst.msk [vmem:[#allocation3 + $0x98] sm:$0xf] %vm930, %v1072
    %1226 = vst.msk [vmem:[#allocation3 + $0x9c] sm:$0xf] %vm930, %v1074
    %1227 = vst.msk [vmem:[#allocation3 + $0xa0] sm:$0xf] %vm930, %v1076
    %1228 = vst.msk [vmem:[#allocation3 + $0xa4] sm:$0xf] %vm930, %v1078
    %1229 = vst.msk [vmem:[#allocation3 + $0xa8] sm:$0xf] %vm930, %v1080
    %1230 = vst.msk [vmem:[#allocation3 + $0xac] sm:$0xf] %vm930, %v1082
    %1231 = vst.msk [vmem:[#allocation3 + $0xb0] sm:$0xf] %vm930, %v1084
    %1232 = vst.msk [vmem:[#allocation3 + $0xb4] sm:$0xf] %vm930, %v1086
    %1233 = vst.msk [vmem:[#allocation3 + $0xb8] sm:$0xf] %vm930, %v1088
    %1234 = vst.msk [vmem:[#allocation3 + $0xbc] sm:$0xf] %vm930, %v1090
    %1235 = vst.msk [vmem:[#allocation3 + $0xc0] sm:$0xf] %vm930, %v1092
    %1236 = vst.msk [vmem:[#allocation3 + $0xc4] sm:$0xf] %vm930, %v1094
    %1237 = vst.msk [vmem:[#allocation3 + $0xc8] sm:$0xf] %vm930, %v1096
    %1238 = vst.msk [vmem:[#allocation3 + $0xcc] sm:$0xf] %vm930, %v1098
    %1239 = vst.msk [vmem:[#allocation3 + $0xd0] sm:$0xf] %vm930, %v1100
    %1240 = vst.msk [vmem:[#allocation3 + $0xd4] sm:$0xf] %vm930, %v1102
    %1241 = vst.msk [vmem:[#allocation3 + $0xd8] sm:$0xf] %vm930, %v1104
    %1242 = vst.msk [vmem:[#allocation3 + $0xdc] sm:$0xf] %vm930, %v1106
    %1243 = vst.msk [vmem:[#allocation3 + $0xe0] sm:$0xf] %vm930, %v1108
    %1244 = vst.msk [vmem:[#allocation3 + $0xe4] sm:$0xf] %vm930, %v1110
    %1245 = vst.msk [vmem:[#allocation3 + $0xe8] sm:$0xf] %vm930, %v1112
    %1246 = vst.msk [vmem:[#allocation3 + $0xec] sm:$0xf] %vm930, %v1114
    %1247 = vst.msk [vmem:[#allocation3 + $0xf0] sm:$0xf] %vm930, %v1116
    %1248 = vst.msk [vmem:[#allocation3 + $0xf4] sm:$0xf] %vm930, %v1118
    %1249 = vst.msk [vmem:[#allocation3 + $0xf8] sm:$0xf] %vm930, %v1120
    %1250 = vst.msk [vmem:[#allocation3 + $0xfc] sm:$0xf] %vm930, %v1122
    %1251 = vrot.lane.b32.xlu0 %v802, 64
    %v1252 = vpop.permute.xlu0 %1251
    %1253 = vrot.lane.b32.xlu0 %v803, 64
    %v1254 = vpop.permute.xlu0 %1253
    %1255 = vrot.lane.b32.xlu0 %v804, 64
    %v1256 = vpop.permute.xlu0 %1255
    %1257 = vrot.lane.b32.xlu0 %v805, 64
    %v1258 = vpop.permute.xlu0 %1257
    %1259 = vrot.lane.b32.xlu0 %v806, 64
    %v1260 = vpop.permute.xlu0 %1259
    %1261 = vrot.lane.b32.xlu0 %v807, 64
    %v1262 = vpop.permute.xlu0 %1261
    %1263 = vrot.lane.b32.xlu0 %v808, 64
    %v1264 = vpop.permute.xlu0 %1263
    %1265 = vrot.lane.b32.xlu0 %v809, 64
    %v1266 = vpop.permute.xlu0 %1265
    %1267 = vrot.lane.b32.xlu0 %v810, 64
    %v1268 = vpop.permute.xlu0 %1267
    %1269 = vrot.lane.b32.xlu0 %v811, 64
    %v1270 = vpop.permute.xlu0 %1269
    %1271 = vrot.lane.b32.xlu0 %v812, 64
    %v1272 = vpop.permute.xlu0 %1271
    %1273 = vrot.lane.b32.xlu0 %v813, 64
    %v1274 = vpop.permute.xlu0 %1273
    %1275 = vrot.lane.b32.xlu0 %v814, 64
    %v1276 = vpop.permute.xlu0 %1275
    %1277 = vrot.lane.b32.xlu0 %v815, 64
    %v1278 = vpop.permute.xlu0 %1277
    %1279 = vrot.lane.b32.xlu0 %v816, 64
    %v1280 = vpop.permute.xlu0 %1279
    %1281 = vrot.lane.b32.xlu0 %v817, 64
    %v1282 = vpop.permute.xlu0 %1281
    %1283 = vrot.lane.b32.xlu0 %v818, 64
    %v1284 = vpop.permute.xlu0 %1283
    %1285 = vrot.lane.b32.xlu0 %v819, 64
    %v1286 = vpop.permute.xlu0 %1285
    %1287 = vrot.lane.b32.xlu0 %v820, 64
    %v1288 = vpop.permute.xlu0 %1287
    %1289 = vrot.lane.b32.xlu0 %v821, 64
    %v1290 = vpop.permute.xlu0 %1289
    %1291 = vrot.lane.b32.xlu0 %v822, 64
    %v1292 = vpop.permute.xlu0 %1291
    %1293 = vrot.lane.b32.xlu0 %v823, 64
    %v1294 = vpop.permute.xlu0 %1293
    %1295 = vrot.lane.b32.xlu0 %v824, 64
    %v1296 = vpop.permute.xlu0 %1295
    %1297 = vrot.lane.b32.xlu0 %v825, 64
    %v1298 = vpop.permute.xlu0 %1297
    %1299 = vrot.lane.b32.xlu0 %v826, 64
    %v1300 = vpop.permute.xlu0 %1299
    %1301 = vrot.lane.b32.xlu0 %v827, 64
    %v1302 = vpop.permute.xlu0 %1301
    %1303 = vrot.lane.b32.xlu0 %v828, 64
    %v1304 = vpop.permute.xlu0 %1303
    %1305 = vrot.lane.b32.xlu0 %v829, 64
    %v1306 = vpop.permute.xlu0 %1305
    %1307 = vrot.lane.b32.xlu0 %v830, 64
    %v1308 = vpop.permute.xlu0 %1307
    %1309 = vrot.lane.b32.xlu0 %v831, 64
    %v1310 = vpop.permute.xlu0 %1309
    %1311 = vrot.lane.b32.xlu0 %v832, 64
    %v1312 = vpop.permute.xlu0 %1311
    %1313 = vrot.lane.b32.xlu0 %v833, 64
    %v1314 = vpop.permute.xlu0 %1313
    %1315 = vrot.lane.b32.xlu0 %v834, 64
    %v1316 = vpop.permute.xlu0 %1315
    %1317 = vrot.lane.b32.xlu0 %v835, 64
    %v1318 = vpop.permute.xlu0 %1317
    %1319 = vrot.lane.b32.xlu0 %v836, 64
    %v1320 = vpop.permute.xlu0 %1319
    %1321 = vrot.lane.b32.xlu0 %v837, 64
    %v1322 = vpop.permute.xlu0 %1321
    %1323 = vrot.lane.b32.xlu0 %v838, 64
    %v1324 = vpop.permute.xlu0 %1323
    %1325 = vrot.lane.b32.xlu0 %v839, 64
    %v1326 = vpop.permute.xlu0 %1325
    %1327 = vrot.lane.b32.xlu0 %v840, 64
    %v1328 = vpop.permute.xlu0 %1327
    %1329 = vrot.lane.b32.xlu0 %v841, 64
    %v1330 = vpop.permute.xlu0 %1329
    %1331 = vrot.lane.b32.xlu0 %v842, 64
    %v1332 = vpop.permute.xlu0 %1331
    %1333 = vrot.lane.b32.xlu0 %v843, 64
    %v1334 = vpop.permute.xlu0 %1333
    %1335 = vrot.lane.b32.xlu0 %v844, 64
    %v1336 = vpop.permute.xlu0 %1335
    %1337 = vrot.lane.b32.xlu0 %v845, 64
    %v1338 = vpop.permute.xlu0 %1337
    %1339 = vrot.lane.b32.xlu0 %v846, 64
    %v1340 = vpop.permute.xlu0 %1339
    %1341 = vrot.lane.b32.xlu0 %v847, 64
    %v1342 = vpop.permute.xlu0 %1341
    %1343 = vrot.lane.b32.xlu0 %v848, 64
    %v1344 = vpop.permute.xlu0 %1343
    %1345 = vrot.lane.b32.xlu0 %v849, 64
    %v1346 = vpop.permute.xlu0 %1345
    %1347 = vrot.lane.b32.xlu0 %v850, 64
    %v1348 = vpop.permute.xlu0 %1347
    %1349 = vrot.lane.b32.xlu0 %v851, 64
    %v1350 = vpop.permute.xlu0 %1349
    %1351 = vrot.lane.b32.xlu0 %v852, 64
    %v1352 = vpop.permute.xlu0 %1351
    %1353 = vrot.lane.b32.xlu0 %v853, 64
    %v1354 = vpop.permute.xlu0 %1353
    %1355 = vrot.lane.b32.xlu0 %v854, 64
    %v1356 = vpop.permute.xlu0 %1355
    %1357 = vrot.lane.b32.xlu0 %v855, 64
    %v1358 = vpop.permute.xlu0 %1357
    %1359 = vrot.lane.b32.xlu0 %v856, 64
    %v1360 = vpop.permute.xlu0 %1359
    %1361 = vrot.lane.b32.xlu0 %v857, 64
    %v1362 = vpop.permute.xlu0 %1361
    %1363 = vrot.lane.b32.xlu0 %v858, 64
    %v1364 = vpop.permute.xlu0 %1363
    %1365 = vrot.lane.b32.xlu0 %v859, 64
    %v1366 = vpop.permute.xlu0 %1365
    %1367 = vrot.lane.b32.xlu0 %v860, 64
    %v1368 = vpop.permute.xlu0 %1367
    %1369 = vrot.lane.b32.xlu0 %v861, 64
    %v1370 = vpop.permute.xlu0 %1369
    %1371 = vrot.lane.b32.xlu0 %v862, 64
    %v1372 = vpop.permute.xlu0 %1371
    %1373 = vrot.lane.b32.xlu0 %v863, 64
    %v1374 = vpop.permute.xlu0 %1373
    %1375 = vrot.lane.b32.xlu0 %v864, 64
    %v1376 = vpop.permute.xlu0 %1375
    %1377 = vrot.lane.b32.xlu0 %v865, 64
    %v1378 = vpop.permute.xlu0 %1377
    %1443 = vst.msk [vmem:[#allocation4] sm:$0xf] %vm930, %v1252
    %1444 = vst.msk [vmem:[#allocation4 + $0x4] sm:$0xf] %vm930, %v1254
    %1445 = vst.msk [vmem:[#allocation4 + $0x8] sm:$0xf] %vm930, %v1256
    %1446 = vst.msk [vmem:[#allocation4 + $0xc] sm:$0xf] %vm930, %v1258
    %1447 = vst.msk [vmem:[#allocation4 + $0x10] sm:$0xf] %vm930, %v1260
    %1448 = vst.msk [vmem:[#allocation4 + $0x14] sm:$0xf] %vm930, %v1262
    %1449 = vst.msk [vmem:[#allocation4 + $0x18] sm:$0xf] %vm930, %v1264
    %1450 = vst.msk [vmem:[#allocation4 + $0x1c] sm:$0xf] %vm930, %v1266
    %1451 = vst.msk [vmem:[#allocation4 + $0x20] sm:$0xf] %vm930, %v1268
    %1452 = vst.msk [vmem:[#allocation4 + $0x24] sm:$0xf] %vm930, %v1270
    %1453 = vst.msk [vmem:[#allocation4 + $0x28] sm:$0xf] %vm930, %v1272
    %1454 = vst.msk [vmem:[#allocation4 + $0x2c] sm:$0xf] %vm930, %v1274
    %1455 = vst.msk [vmem:[#allocation4 + $0x30] sm:$0xf] %vm930, %v1276
    %1456 = vst.msk [vmem:[#allocation4 + $0x34] sm:$0xf] %vm930, %v1278
    %1457 = vst.msk [vmem:[#allocation4 + $0x38] sm:$0xf] %vm930, %v1280
    %1458 = vst.msk [vmem:[#allocation4 + $0x3c] sm:$0xf] %vm930, %v1282
    %1459 = vst.msk [vmem:[#allocation4 + $0x40] sm:$0xf] %vm930, %v1284
    %1460 = vst.msk [vmem:[#allocation4 + $0x44] sm:$0xf] %vm930, %v1286
    %1461 = vst.msk [vmem:[#allocation4 + $0x48] sm:$0xf] %vm930, %v1288
    %1462 = vst.msk [vmem:[#allocation4 + $0x4c] sm:$0xf] %vm930, %v1290
    %1463 = vst.msk [vmem:[#allocation4 + $0x50] sm:$0xf] %vm930, %v1292
    %1464 = vst.msk [vmem:[#allocation4 + $0x54] sm:$0xf] %vm930, %v1294
    %1465 = vst.msk [vmem:[#allocation4 + $0x58] sm:$0xf] %vm930, %v1296
    %1466 = vst.msk [vmem:[#allocation4 + $0x5c] sm:$0xf] %vm930, %v1298
    %1467 = vst.msk [vmem:[#allocation4 + $0x60] sm:$0xf] %vm930, %v1300
    %1468 = vst.msk [vmem:[#allocation4 + $0x64] sm:$0xf] %vm930, %v1302
    %1469 = vst.msk [vmem:[#allocation4 + $0x68] sm:$0xf] %vm930, %v1304
    %1470 = vst.msk [vmem:[#allocation4 + $0x6c] sm:$0xf] %vm930, %v1306
    %1471 = vst.msk [vmem:[#allocation4 + $0x70] sm:$0xf] %vm930, %v1308
    %1472 = vst.msk [vmem:[#allocation4 + $0x74] sm:$0xf] %vm930, %v1310
    %1473 = vst.msk [vmem:[#allocation4 + $0x78] sm:$0xf] %vm930, %v1312
    %1474 = vst.msk [vmem:[#allocation4 + $0x7c] sm:$0xf] %vm930, %v1314
    %1475 = vst.msk [vmem:[#allocation4 + $0x80] sm:$0xf] %vm930, %v1316
    %1476 = vst.msk [vmem:[#allocation4 + $0x84] sm:$0xf] %vm930, %v1318
    %1477 = vst.msk [vmem:[#allocation4 + $0x88] sm:$0xf] %vm930, %v1320
    %1478 = vst.msk [vmem:[#allocation4 + $0x8c] sm:$0xf] %vm930, %v1322
    %1479 = vst.msk [vmem:[#allocation4 + $0x90] sm:$0xf] %vm930, %v1324
    %1480 = vst.msk [vmem:[#allocation4 + $0x94] sm:$0xf] %vm930, %v1326
    %1481 = vst.msk [vmem:[#allocation4 + $0x98] sm:$0xf] %vm930, %v1328
    %1482 = vst.msk [vmem:[#allocation4 + $0x9c] sm:$0xf] %vm930, %v1330
    %1483 = vst.msk [vmem:[#allocation4 + $0xa0] sm:$0xf] %vm930, %v1332
    %1484 = vst.msk [vmem:[#allocation4 + $0xa4] sm:$0xf] %vm930, %v1334
    %1485 = vst.msk [vmem:[#allocation4 + $0xa8] sm:$0xf] %vm930, %v1336
    %1486 = vst.msk [vmem:[#allocation4 + $0xac] sm:$0xf] %vm930, %v1338
    %1487 = vst.msk [vmem:[#allocation4 + $0xb0] sm:$0xf] %vm930, %v1340
    %1488 = vst.msk [vmem:[#allocation4 + $0xb4] sm:$0xf] %vm930, %v1342
    %1489 = vst.msk [vmem:[#allocation4 + $0xb8] sm:$0xf] %vm930, %v1344
    %1490 = vst.msk [vmem:[#allocation4 + $0xbc] sm:$0xf] %vm930, %v1346
    %1491 = vst.msk [vmem:[#allocation4 + $0xc0] sm:$0xf] %vm930, %v1348
    %1492 = vst.msk [vmem:[#allocation4 + $0xc4] sm:$0xf] %vm930, %v1350
    %1493 = vst.msk [vmem:[#allocation4 + $0xc8] sm:$0xf] %vm930, %v1352
    %1494 = vst.msk [vmem:[#allocation4 + $0xcc] sm:$0xf] %vm930, %v1354
    %1495 = vst.msk [vmem:[#allocation4 + $0xd0] sm:$0xf] %vm930, %v1356
    %1496 = vst.msk [vmem:[#allocation4 + $0xd4] sm:$0xf] %vm930, %v1358
    %1497 = vst.msk [vmem:[#allocation4 + $0xd8] sm:$0xf] %vm930, %v1360
    %1498 = vst.msk [vmem:[#allocation4 + $0xdc] sm:$0xf] %vm930, %v1362
    %1499 = vst.msk [vmem:[#allocation4 + $0xe0] sm:$0xf] %vm930, %v1364
    %1500 = vst.msk [vmem:[#allocation4 + $0xe4] sm:$0xf] %vm930, %v1366
    %1501 = vst.msk [vmem:[#allocation4 + $0xe8] sm:$0xf] %vm930, %v1368
    %1502 = vst.msk [vmem:[#allocation4 + $0xec] sm:$0xf] %vm930, %v1370
    %1503 = vst.msk [vmem:[#allocation4 + $0xf0] sm:$0xf] %vm930, %v1372
    %1504 = vst.msk [vmem:[#allocation4 + $0xf4] sm:$0xf] %vm930, %v1374
    %1505 = vst.msk [vmem:[#allocation4 + $0xf8] sm:$0xf] %vm930, %v1376
    %1506 = vst.msk [vmem:[#allocation4 + $0xfc] sm:$0xf] %vm930, %v1378
    %v1507 = vld [vmem:[%s5] sm:$0xf]
    %v1508 = vld [vmem:[%s5 + $0x4] sm:$0xf]
    %v1509 = vld [vmem:[%s5 + $0x8] sm:$0xf]
    %v1510 = vld [vmem:[%s5 + $0xc] sm:$0xf]
    %v1511 = vld [vmem:[%s5 + $0x10] sm:$0xf]
    %v1512 = vld [vmem:[%s5 + $0x14] sm:$0xf]
    %v1513 = vld [vmem:[%s5 + $0x18] sm:$0xf]
    %v1514 = vld [vmem:[%s5 + $0x1c] sm:$0xf]
    %v1515 = vld [vmem:[%s5 + $0x20] sm:$0xf]
    %v1516 = vld [vmem:[%s5 + $0x24] sm:$0xf]
    %v1517 = vld [vmem:[%s5 + $0x28] sm:$0xf]
    %v1518 = vld [vmem:[%s5 + $0x2c] sm:$0xf]
    %v1519 = vld [vmem:[%s5 + $0x30] sm:$0xf]
    %v1520 = vld [vmem:[%s5 + $0x34] sm:$0xf]
    %v1521 = vld [vmem:[%s5 + $0x38] sm:$0xf]
    %v1522 = vld [vmem:[%s5 + $0x3c] sm:$0xf]
    %v1523 = vld [vmem:[%s5 + $0x40] sm:$0xf]
    %v1524 = vld [vmem:[%s5 + $0x44] sm:$0xf]
    %v1525 = vld [vmem:[%s5 + $0x48] sm:$0xf]
    %v1526 = vld [vmem:[%s5 + $0x4c] sm:$0xf]
    %v1527 = vld [vmem:[%s5 + $0x50] sm:$0xf]
    %v1528 = vld [vmem:[%s5 + $0x54] sm:$0xf]
    %v1529 = vld [vmem:[%s5 + $0x58] sm:$0xf]
    %v1530 = vld [vmem:[%s5 + $0x5c] sm:$0xf]
    %v1531 = vld [vmem:[%s5 + $0x60] sm:$0xf]
    %v1532 = vld [vmem:[%s5 + $0x64] sm:$0xf]
    %v1533 = vld [vmem:[%s5 + $0x68] sm:$0xf]
    %v1534 = vld [vmem:[%s5 + $0x6c] sm:$0xf]
    %v1535 = vld [vmem:[%s5 + $0x70] sm:$0xf]
    %v1536 = vld [vmem:[%s5 + $0x74] sm:$0xf]
    %v1537 = vld [vmem:[%s5 + $0x78] sm:$0xf]
    %v1538 = vld [vmem:[%s5 + $0x7c] sm:$0xf]
    loop: start=0, step=1, limit=8
    $region34: #{tpu_custom_call.1} parent=1 // loop_pre_header
      _
    $region35: #{tpu_custom_call.1} parent=1 // loop_header
      %s1540 = sphi 0, %s1544
      %p1541 = scmp.ge.s32.totalorder %s1540, 8
    $region36: #{tpu_custom_call.1} parent=1 // loop_header_branch
      %1543 = sbr.rel (%p1541) target = $region40
    $region37: #{tpu_custom_call.1} parent=1 // loop_body
      %s1545 = smul.u32 %s1540, 64
      %s1546 = sshra.s32 %s1545, 3
      %s1547 = sand.u32 %s1545, 7
      %s1548 = smul.addr %s1546, 4
      %s1549 = scalar_lea.vmem [#allocation2], %s1548
      %v1550 = vld [vmem:[%s1549] sm:$0xf]
      %v1551 = vld [vmem:[%s1549 + $0x4] sm:$0xf]
      %v1552 = vld [vmem:[%s1549 + $0x8] sm:$0xf]
      %v1553 = vld [vmem:[%s1549 + $0xc] sm:$0xf]
      %v1554 = vld [vmem:[%s1549 + $0x10] sm:$0xf]
      %v1555 = vld [vmem:[%s1549 + $0x14] sm:$0xf]
      %v1556 = vld [vmem:[%s1549 + $0x18] sm:$0xf]
      %v1557 = vld [vmem:[%s1549 + $0x1c] sm:$0xf]
      %s1558 = smul.addr %s1546, 4
      %s1559 = scalar_lea.vmem [#allocation3], %s1558
      %v1560 = vld [vmem:[%s1559] sm:$0xf]
      %v1561 = vld [vmem:[%s1559 + $0x4] sm:$0xf]
      %v1562 = vld [vmem:[%s1559 + $0x8] sm:$0xf]
      %v1563 = vld [vmem:[%s1559 + $0xc] sm:$0xf]
      %v1564 = vld [vmem:[%s1559 + $0x10] sm:$0xf]
      %v1565 = vld [vmem:[%s1559 + $0x14] sm:$0xf]
      %v1566 = vld [vmem:[%s1559 + $0x18] sm:$0xf]
      %v1567 = vld [vmem:[%s1559 + $0x1c] sm:$0xf]
      %s1568 = smul.addr %s1546, 4
      %s1569 = scalar_lea.vmem [#allocation4], %s1568
      %v1570 = vld [vmem:[%s1569] sm:$0xf]
      %v1571 = vld [vmem:[%s1569 + $0x4] sm:$0xf]
      %v1572 = vld [vmem:[%s1569 + $0x8] sm:$0xf]
      %v1573 = vld [vmem:[%s1569 + $0xc] sm:$0xf]
      %v1574 = vld [vmem:[%s1569 + $0x10] sm:$0xf]
      %v1575 = vld [vmem:[%s1569 + $0x14] sm:$0xf]
      %v1576 = vld [vmem:[%s1569 + $0x18] sm:$0xf]
      %v1577 = vld [vmem:[%s1569 + $0x1c] sm:$0xf]
      %v1586 = vunpack.c.l.b16 %v1560
      %v1587 = vunpack.c.l.b16 %v1561
      %v1588 = vunpack.c.l.b16 %v1562
      %v1589 = vunpack.c.l.b16 %v1563
      %v1590 = vunpack.c.l.b16 %v1564
      %v1591 = vunpack.c.l.b16 %v1565
      %v1592 = vunpack.c.l.b16 %v1566
      %v1593 = vunpack.c.l.b16 %v1567
      %v1594 = vpack.c.b16 %v1587, %v1586
      %v1595 = vpack.c.b16 %v1589, %v1588
      %v1596 = vpack.c.b16 %v1591, %v1590
      %v1597 = vpack.c.b16 %v1593, %v1592
      %v1634 = vunpack.c.l.b16 %v1507
      %v1635 = vunpack.c.l.b16 %v1508
      %v1636 = vunpack.c.l.b16 %v1509
      %v1637 = vunpack.c.l.b16 %v1510
      %v1638 = vunpack.c.l.b16 %v1511
      %v1639 = vunpack.c.l.b16 %v1512
      %v1640 = vunpack.c.l.b16 %v1513
      %v1641 = vunpack.c.l.b16 %v1514
      %v1642 = vunpack.c.l.b16 %v1515
      %v1643 = vunpack.c.l.b16 %v1516
      %v1644 = vunpack.c.l.b16 %v1517
      %v1645 = vunpack.c.l.b16 %v1518
      %v1646 = vunpack.c.l.b16 %v1519
      %v1647 = vunpack.c.l.b16 %v1520
      %v1648 = vunpack.c.l.b16 %v1521
      %v1649 = vunpack.c.l.b16 %v1522
      %v1650 = vunpack.c.l.b16 %v1523
      %v1651 = vunpack.c.l.b16 %v1524
      %v1652 = vunpack.c.l.b16 %v1525
      %v1653 = vunpack.c.l.b16 %v1526
      %v1654 = vunpack.c.l.b16 %v1527
      %v1655 = vunpack.c.l.b16 %v1528
      %v1656 = vunpack.c.l.b16 %v1529
      %v1657 = vunpack.c.l.b16 %v1530
      %v1658 = vunpack.c.l.b16 %v1531
      %v1659 = vunpack.c.l.b16 %v1532
      %v1660 = vunpack.c.l.b16 %v1533
      %v1661 = vunpack.c.l.b16 %v1534
      %v1662 = vunpack.c.l.b16 %v1535
      %v1663 = vunpack.c.l.b16 %v1536
      %v1664 = vunpack.c.l.b16 %v1537
      %v1665 = vunpack.c.l.b16 %v1538
      %v1666 = vpack.c.b16 %v1635, %v1634
      %v1667 = vpack.c.b16 %v1637, %v1636
      %v1668 = vpack.c.b16 %v1639, %v1638
      %v1669 = vpack.c.b16 %v1641, %v1640
      %v1670 = vpack.c.b16 %v1643, %v1642
      %v1671 = vpack.c.b16 %v1645, %v1644
      %v1672 = vpack.c.b16 %v1647, %v1646
      %v1673 = vpack.c.b16 %v1649, %v1648
      %v1674 = vpack.c.b16 %v1651, %v1650
      %v1675 = vpack.c.b16 %v1653, %v1652
      %v1676 = vpack.c.b16 %v1655, %v1654
      %v1677 = vpack.c.b16 %v1657, %v1656
      %v1678 = vpack.c.b16 %v1659, %v1658
      %v1679 = vpack.c.b16 %v1661, %v1660
      %v1680 = vpack.c.b16 %v1663, %v1662
      %v1681 = vpack.c.b16 %v1665, %v1664
      %v1698 = vmul.bf16 %v1594, %v1666
      %v1699 = vmul.bf16 %v1595, %v1667
      %v1700 = vmul.bf16 %v1596, %v1668
      %v1701 = vmul.bf16 %v1597, %v1669
      %v1702 = vmul.bf16 %v1594, %v1670
      %v1703 = vmul.bf16 %v1595, %v1671
      %v1704 = vmul.bf16 %v1596, %v1672
      %v1705 = vmul.bf16 %v1597, %v1673
      %v1706 = vmul.bf16 %v1594, %v1674
      %v1707 = vmul.bf16 %v1595, %v1675
      %v1708 = vmul.bf16 %v1596, %v1676
      %v1709 = vmul.bf16 %v1597, %v1677
      %v1710 = vmul.bf16 %v1594, %v1678
      %v1711 = vmul.bf16 %v1595, %v1679
      %v1712 = vmul.bf16 %v1596, %v1680
      %v1713 = vmul.bf16 %v1597, %v1681
      %v1722 = vunpack.c.l.b16 %v1570
      %v1723 = vunpack.c.l.b16 %v1571
      %v1724 = vunpack.c.l.b16 %v1572
      %v1725 = vunpack.c.l.b16 %v1573
      %v1726 = vunpack.c.l.b16 %v1574
      %v1727 = vunpack.c.l.b16 %v1575
      %v1728 = vunpack.c.l.b16 %v1576
      %v1729 = vunpack.c.l.b16 %v1577
      %v1730 = vpack.c.b16 %v1723, %v1722
      %v1731 = vpack.c.b16 %v1725, %v1724
      %v1732 = vpack.c.b16 %v1727, %v1726
      %v1733 = vpack.c.b16 %v1729, %v1728
      %v1738 = vmul.bf16 %v1730, %v1666
      %v1739 = vmul.bf16 %v1731, %v1667
      %v1740 = vmul.bf16 %v1732, %v1668
      %v1741 = vmul.bf16 %v1733, %v1669
      %v1742 = vmul.bf16 %v1730, %v1670
      %v1743 = vmul.bf16 %v1731, %v1671
      %v1744 = vmul.bf16 %v1732, %v1672
      %v1745 = vmul.bf16 %v1733, %v1673
      %v1746 = vmul.bf16 %v1730, %v1674
      %v1747 = vmul.bf16 %v1731, %v1675
      %v1748 = vmul.bf16 %v1732, %v1676
      %v1749 = vmul.bf16 %v1733, %v1677
      %v1750 = vmul.bf16 %v1730, %v1678
      %v1751 = vmul.bf16 %v1731, %v1679
      %v1752 = vmul.bf16 %v1732, %v1680
      %v1753 = vmul.bf16 %v1733, %v1681
      %p1754 = scmp.lt.s32.totalorder %s1540, 0
      %s1755 = ssub.s32 0, %s1540
      %s1756 = scalar_select %p1754, %s1755, %s1540
      %s1757 = sand.u32 %s1756, 3
      %s1758 = ssub.s32 0, %s1757
      %s1759 = scalar_select %p1754, %s1758, %s1757
      %p1760 = scmp.ne.s32.totalorder %s1759, 0
      %p1761 = scmp.lt.s32.totalorder %s1759, 0
      %p1762 = pnand %p1761, %p1760
      %p1763 = pneg %p1762
      %s1764 = sadd.s32 %s1759, 4
      %s1765 = scalar_select %p1763, %s1764, %s1759
      %s1766 = smul.u32 %s1765, 16
      %s1767 = smul.addr %s1766, 8
      %s1768 = scalar_lea.vmem [#allocation6], %s1767
      %v1769 = vld [vmem:[%s1768] sm:$0xff]
      %v1770 = vld [vmem:[%s1768 + $0x8] sm:$0xff]
      %v1771 = vld [vmem:[%s1768 + $0x10] sm:$0xff]
      %v1772 = vld [vmem:[%s1768 + $0x18] sm:$0xff]
      %v1773 = vld [vmem:[%s1768 + $0x20] sm:$0xff]
      %v1774 = vld [vmem:[%s1768 + $0x28] sm:$0xff]
      %v1775 = vld [vmem:[%s1768 + $0x30] sm:$0xff]
      %v1776 = vld [vmem:[%s1768 + $0x38] sm:$0xff]
      %v1777 = vld [vmem:[%s1768 + $0x40] sm:$0xff]
      %v1778 = vld [vmem:[%s1768 + $0x48] sm:$0xff]
      %v1779 = vld [vmem:[%s1768 + $0x50] sm:$0xff]
      %v1780 = vld [vmem:[%s1768 + $0x58] sm:$0xff]
      %v1781 = vld [vmem:[%s1768 + $0x60] sm:$0xff]
      %v1782 = vld [vmem:[%s1768 + $0x68] sm:$0xff]
      %v1783 = vld [vmem:[%s1768 + $0x70] sm:$0xff]
      %v1784 = vld [vmem:[%s1768 + $0x78] sm:$0xff]
      %v1793 = vunpack.c.l.b16 %v1550
      %v1794 = vunpack.c.l.b16 %v1551
      %v1795 = vunpack.c.l.b16 %v1552
      %v1796 = vunpack.c.l.b16 %v1553
      %v1797 = vunpack.c.l.b16 %v1554
      %v1798 = vunpack.c.l.b16 %v1555
      %v1799 = vunpack.c.l.b16 %v1556
      %v1800 = vunpack.c.l.b16 %v1557
      %v1801 = vpack.c.b16 %v1794, %v1793
      %v1802 = vpack.c.b16 %v1796, %v1795
      %v1803 = vpack.c.b16 %v1798, %v1797
      %v1804 = vpack.c.b16 %v1800, %v1799
      %v1806 = vsel %vm288, %v1801, 0
      %v1809 = vsel %vm288, %v1802, 0
      %v1812 = vsel %vm288, %v1803, 0
      %v1815 = vsel %vm288, %v1804, 0
      %v1818 = vsel %vm288, %v1698, 0
      %v1821 = vsel %vm288, %v1699, 0
      %v1824 = vsel %vm288, %v1700, 0
      %v1827 = vsel %vm288, %v1701, 0
      %v1830 = vsel %vm288, %v1702, 0
      %v1833 = vsel %vm288, %v1703, 0
      %v1836 = vsel %vm288, %v1704, 0
      %v1839 = vsel %vm288, %v1705, 0
      %v1842 = vsel %vm288, %v1706, 0
      %v1845 = vsel %vm288, %v1707, 0
      %v1848 = vsel %vm288, %v1708, 0
      %v1851 = vsel %vm288, %v1709, 0
      %v1854 = vsel %vm288, %v1710, 0
      %v1857 = vsel %vm288, %v1711, 0
      %v1860 = vsel %vm288, %v1712, 0
      %v1863 = vsel %vm288, %v1713, 0
      %1865 = vmatprep.subr.bf16.mxu0 0
      %1866 = vmatpush1.bf16.xpose.msra.mxu0 %v1839
      %1867 = vmatprep.subr.bf16.mxu0 0
      %1868 = vmatpush1.bf16.xpose.msra.mxu0 %v1836
      %1869 = vmatprep.subr.bf16.mxu0 0
      %1870 = vmatpush1.bf16.xpose.msra.mxu0 %v1833
      %1871 = vmatprep.subr.bf16.mxu0 0
      %1872 = vmatpush1.bf16.xpose.msra.mxu0 %v1830
      %1873 = vmatprep.subr.bf16.mxu0 0
      %1874 = vmatpush1.bf16.xpose.msra.mxu0 %v1827
      %1875 = vmatprep.subr.bf16.mxu0 0
      %1876 = vmatpush1.bf16.xpose.msra.mxu0 %v1824
      %1877 = vmatprep.subr.bf16.mxu0 0
      %1878 = vmatpush1.bf16.xpose.msra.mxu0 %v1821
      %1879 = vmatprep.subr.bf16.mxu0 0
      %1880 = vmatpush1.bf16.xpose.msra.mxu0 %v1818
      %1881 = vmatprep.subr.bf16.mxu0 0
      %1882 = vmatpush2.bf16.xpose.msra.mxu0 %v1863
      %1883 = vmatprep.subr.bf16.mxu0 0
      %1884 = vmatpush2.bf16.xpose.msra.mxu0 %v1860
      %1885 = vmatprep.subr.bf16.mxu0 0
      %1886 = vmatpush2.bf16.xpose.msra.mxu0 %v1857
      %1887 = vmatprep.subr.bf16.mxu0 0
      %1888 = vmatpush2.bf16.xpose.msra.mxu0 %v1854
      %1889 = vmatprep.subr.bf16.mxu0 0
      %1890 = vmatpush2.bf16.xpose.msra.mxu0 %v1851
      %1891 = vmatprep.subr.bf16.mxu0 0
      %1892 = vmatpush2.bf16.xpose.msra.mxu0 %v1848
      %1893 = vmatprep.subr.bf16.mxu0 0
      %1894 = vmatpush2.bf16.xpose.msra.mxu0 %v1845
      %1895 = vmatprep.subr.bf16.mxu0 0
      %1896 = vmatpush2.bf16.xpose.msra.mxu0 %v1842
      %1897 = vmatprep.mubr.bf16.mxu0 0
      %1898 = vmatmul.mubr.bf16.gmra.mxu0 %v1806
      %v1899 = vpop.f32.mrf.mxu0
      %v1900 = vadd.f32 %v1769, %v1899
      %v1901 = vpop.f32.mrf.mxu0
      %v1902 = vadd.f32 %v1770, %v1901
      %v1903 = vpop.f32.mrf.mxu0
      %v1904 = vadd.f32 %v1771, %v1903
      %v1905 = vpop.f32.mrf.mxu0
      %v1906 = vadd.f32 %v1772, %v1905
      %1907 = vmatprep.mubr.bf16.mxu0 0
      %1908 = vmatmul.mubr.bf16.gmra.mxu0 %v1809
      %v1909 = vpop.f32.mrf.mxu0
      %v1910 = vadd.f32 %v1773, %v1909
      %v1911 = vpop.f32.mrf.mxu0
      %v1912 = vadd.f32 %v1774, %v1911
      %v1913 = vpop.f32.mrf.mxu0
      %v1914 = vadd.f32 %v1775, %v1913
      %v1915 = vpop.f32.mrf.mxu0
      %v1916 = vadd.f32 %v1776, %v1915
      %1917 = vmatprep.mubr.bf16.mxu0 0
      %1918 = vmatmul.mubr.bf16.gmra.mxu0 %v1812
      %v1919 = vpop.f32.mrf.mxu0
      %v1920 = vadd.f32 %v1777, %v1919
      %v1921 = vpop.f32.mrf.mxu0
      %v1922 = vadd.f32 %v1778, %v1921
      %v1923 = vpop.f32.mrf.mxu0
      %v1924 = vadd.f32 %v1779, %v1923
      %v1925 = vpop.f32.mrf.mxu0
      %v1926 = vadd.f32 %v1780, %v1925
      %1927 = vmatprep.mubr.bf16.mxu0 0
      %1928 = vmatmul.mubr.bf16.gmra.mxu0 %v1815
      %v1929 = vpop.f32.mrf.mxu0
      %v1930 = vadd.f32 %v1781, %v1929
      %v1931 = vpop.f32.mrf.mxu0
      %v1932 = vadd.f32 %v1782, %v1931
      %v1933 = vpop.f32.mrf.mxu0
      %v1934 = vadd.f32 %v1783, %v1933
      %v1935 = vpop.f32.mrf.mxu0
      %v1936 = vadd.f32 %v1784, %v1935
      %1937 = vdwg.mxu0
      %v1938 = vmax.f32 %v1900, %v1902
      %1939 = vmax.xlane.f32.xlu0 %v1938
      %v1940 = vpop.xlane.xlu0 %1939
      %v1941 = vmax.f32 %v1904, %v1906
      %1942 = vmax.xlane.f32.xlu0 %v1941
      %v1943 = vpop.xlane.xlu0 %1942
      %v1944 = vmax.f32 %v1910, %v1912
      %1945 = vmax.xlane.f32.xlu0 %v1944
      %v1946 = vpop.xlane.xlu0 %1945
      %v1947 = vmax.f32 %v1914, %v1916
      %1948 = vmax.xlane.f32.xlu0 %v1947
      %v1949 = vpop.xlane.xlu0 %1948
      %v1950 = vmax.f32 %v1920, %v1922
      %1951 = vmax.xlane.f32.xlu0 %v1950
      %v1952 = vpop.xlane.xlu0 %1951
      %v1953 = vmax.f32 %v1924, %v1926
      %1954 = vmax.xlane.f32.xlu0 %v1953
      %v1955 = vpop.xlane.xlu0 %1954
      %v1956 = vmax.f32 %v1930, %v1932
      %1957 = vmax.xlane.f32.xlu0 %v1956
      %v1958 = vpop.xlane.xlu0 %1957
      %v1959 = vmax.f32 %v1934, %v1936
      %1960 = vmax.xlane.f32.xlu0 %v1959
      %v1961 = vpop.xlane.xlu0 %1960
      %v1962 = vsub.f32 %v1900, %v1940
      %v1963 = vsub.f32 %v1902, %v1940
      %v1964 = vsub.f32 %v1904, %v1943
      %v1965 = vsub.f32 %v1906, %v1943
      %v1966 = vsub.f32 %v1910, %v1946
      %v1967 = vsub.f32 %v1912, %v1946
      %v1968 = vsub.f32 %v1914, %v1949
      %v1969 = vsub.f32 %v1916, %v1949
      %v1970 = vsub.f32 %v1920, %v1952
      %v1971 = vsub.f32 %v1922, %v1952
      %v1972 = vsub.f32 %v1924, %v1955
      %v1973 = vsub.f32 %v1926, %v1955
      %v1974 = vsub.f32 %v1930, %v1958
      %v1975 = vsub.f32 %v1932, %v1958
      %v1976 = vsub.f32 %v1934, %v1961
      %v1977 = vsub.f32 %v1936, %v1961
      %v1978 = vmul.f32 %v1962, 1.442695
      %v1979 = vpow.pop %v1978
      %v1980 = vmul.f32 %v1963, 1.442695
      %v1981 = vpow.pop %v1980
      %v1982 = vmul.f32 %v1964, 1.442695
      %v1983 = vpow.pop %v1982
      %v1984 = vmul.f32 %v1965, 1.442695
      %v1985 = vpow.pop %v1984
      %v1986 = vmul.f32 %v1966, 1.442695
      %v1987 = vpow.pop %v1986
      %v1988 = vmul.f32 %v1967, 1.442695
      %v1989 = vpow.pop %v1988
      %v1990 = vmul.f32 %v1968, 1.442695
      %v1991 = vpow.pop %v1990
      %v1992 = vmul.f32 %v1969, 1.442695
      %v1993 = vpow.pop %v1992
      %v1994 = vmul.f32 %v1970, 1.442695
      %v1995 = vpow.pop %v1994
      %v1996 = vmul.f32 %v1971, 1.442695
      %v1997 = vpow.pop %v1996
      %v1998 = vmul.f32 %v1972, 1.442695
      %v1999 = vpow.pop %v1998
      %v2000 = vmul.f32 %v1973, 1.442695
      %v2001 = vpow.pop %v2000
      %v2002 = vmul.f32 %v1974, 1.442695
      %v2003 = vpow.pop %v2002
      %v2004 = vmul.f32 %v1975, 1.442695
      %v2005 = vpow.pop %v2004
      %v2006 = vmul.f32 %v1976, 1.442695
      %v2007 = vpow.pop %v2006
      %v2008 = vmul.f32 %v1977, 1.442695
      %v2009 = vpow.pop %v2008
      %v2010 = vpack.c.bf16 %v1983, %v1979
      %v2011 = vpack.c.bf16 %v1985, %v1981
      %v2012 = vpack.c.bf16 %v1991, %v1987
      %v2013 = vpack.c.bf16 %v1993, %v1989
      %v2014 = vpack.c.bf16 %v1999, %v1995
      %v2015 = vpack.c.bf16 %v2001, %v1997
      %v2016 = vpack.c.bf16 %v2007, %v2003
      %v2017 = vpack.c.bf16 %v2009, %v2005
      %2018 = vmatprep.subr.bf16.mxu0 0
      %2019 = vmatpush1.bf16.msra.mxu0 %v1745
      %2020 = vmatprep.subr.bf16.mxu0 0
      %2021 = vmatpush1.bf16.msra.mxu0 %v1744
      %2022 = vmatprep.subr.bf16.mxu0 0
      %2023 = vmatpush1.bf16.msra.mxu0 %v1743
      %2024 = vmatprep.subr.bf16.mxu0 0
      %2025 = vmatpush1.bf16.msra.mxu0 %v1742
      %2026 = vmatprep.subr.bf16.mxu0 0
      %2027 = vmatpush1.bf16.msra.mxu0 %v1741
      %2028 = vmatprep.subr.bf16.mxu0 0
      %2029 = vmatpush1.bf16.msra.mxu0 %v1740
      %2030 = vmatprep.subr.bf16.mxu0 0
      %2031 = vmatpush1.bf16.msra.mxu0 %v1739
      %2032 = vmatprep.subr.bf16.mxu0 0
      %2033 = vmatpush1.bf16.msra.mxu0 %v1738
      %2034 = vmatprep.subr.bf16.mxu0 0
      %2035 = vmatpush2.bf16.msra.mxu0 %v1753
      %2036 = vmatprep.subr.bf16.mxu0 0
      %2037 = vmatpush2.bf16.msra.mxu0 %v1752
      %2038 = vmatprep.subr.bf16.mxu0 0
      %2039 = vmatpush2.bf16.msra.mxu0 %v1751
      %2040 = vmatprep.subr.bf16.mxu0 0
      %2041 = vmatpush2.bf16.msra.mxu0 %v1750
      %2042 = vmatprep.subr.bf16.mxu0 0
      %2043 = vmatpush2.bf16.msra.mxu0 %v1749
      %2044 = vmatprep.subr.bf16.mxu0 0
      %2045 = vmatpush2.bf16.msra.mxu0 %v1748
      %2046 = vmatprep.subr.bf16.mxu0 0
      %2047 = vmatpush2.bf16.msra.mxu0 %v1747
      %2048 = vmatprep.subr.bf16.mxu0 0
      %2049 = vmatpush2.bf16.msra.mxu0 %v1746
      %2050 = vmatprep.mubr.bf16.mxu0 %v2011
      %2051 = vmatmul.mubr.bf16.gmra.mxu0 %v2010
      %v2052 = vpop.f32.mrf.mxu0
      %v2053 = vadd.f32 0.0, %v2052
      %v2054 = vpop.f32.mrf.mxu0
      %v2055 = vpop.f32.mrf.mxu0
      %v2056 = vadd.f32 0.0, %v2055
      %v2057 = vpop.f32.mrf.mxu0
      %2058 = vmatprep.mubr.bf16.mxu0 %v2013
      %2059 = vmatmul.mubr.bf16.gmra.mxu0 %v2012
      %v2060 = vpop.f32.mrf.mxu0
      %v2061 = vadd.f32 0.0, %v2060
      %v2062 = vpop.f32.mrf.mxu0
      %v2063 = vpop.f32.mrf.mxu0
      %v2064 = vadd.f32 0.0, %v2063
      %v2065 = vpop.f32.mrf.mxu0
      %2066 = vmatprep.mubr.bf16.mxu0 %v2015
      %2067 = vmatmul.mubr.bf16.gmra.mxu0 %v2014
      %v2068 = vpop.f32.mrf.mxu0
      %v2069 = vadd.f32 0.0, %v2068
      %v2070 = vpop.f32.mrf.mxu0
      %v2071 = vpop.f32.mrf.mxu0
      %v2072 = vadd.f32 0.0, %v2071
      %v2073 = vpop.f32.mrf.mxu0
      %2074 = vmatprep.mubr.bf16.mxu0 %v2017
      %2075 = vmatmul.mubr.bf16.gmra.mxu0 %v2016
      %v2076 = vpop.f32.mrf.mxu0
      %v2077 = vadd.f32 0.0, %v2076
      %v2078 = vpop.f32.mrf.mxu0
      %v2079 = vpop.f32.mrf.mxu0
      %v2080 = vadd.f32 0.0, %v2079
      %v2081 = vpop.f32.mrf.mxu0
      %2082 = vdwg.mxu0
      %2083 = vmatprep.subr.bf16.mxu0 0
      %2084 = vmatpush1.bf16.msra.mxu0 %v1673
      %2085 = vmatprep.subr.bf16.mxu0 0
      %2086 = vmatpush1.bf16.msra.mxu0 %v1672
      %2087 = vmatprep.subr.bf16.mxu0 0
      %2088 = vmatpush1.bf16.msra.mxu0 %v1671
      %2089 = vmatprep.subr.bf16.mxu0 0
      %2090 = vmatpush1.bf16.msra.mxu0 %v1670
      %2091 = vmatprep.subr.bf16.mxu0 0
      %2092 = vmatpush1.bf16.msra.mxu0 %v1669
      %2093 = vmatprep.subr.bf16.mxu0 0
      %2094 = vmatpush1.bf16.msra.mxu0 %v1668
      %2095 = vmatprep.subr.bf16.mxu0 0
      %2096 = vmatpush1.bf16.msra.mxu0 %v1667
      %2097 = vmatprep.subr.bf16.mxu0 0
      %2098 = vmatpush1.bf16.msra.mxu0 %v1666
      %2099 = vmatprep.subr.bf16.mxu0 0
      %2100 = vmatpush2.bf16.msra.mxu0 %v1681
      %2101 = vmatprep.subr.bf16.mxu0 0
      %2102 = vmatpush2.bf16.msra.mxu0 %v1680
      %2103 = vmatprep.subr.bf16.mxu0 0
      %2104 = vmatpush2.bf16.msra.mxu0 %v1679
      %2105 = vmatprep.subr.bf16.mxu0 0
      %2106 = vmatpush2.bf16.msra.mxu0 %v1678
      %2107 = vmatprep.subr.bf16.mxu0 0
      %2108 = vmatpush2.bf16.msra.mxu0 %v1677
      %2109 = vmatprep.subr.bf16.mxu0 0
      %2110 = vmatpush2.bf16.msra.mxu0 %v1676
      %2111 = vmatprep.subr.bf16.mxu0 0
      %2112 = vmatpush2.bf16.msra.mxu0 %v1675
      %2113 = vmatprep.subr.bf16.mxu0 0
      %2114 = vmatpush2.bf16.msra.mxu0 %v1674
      %2115 = vmatprep.mubr.bf16.mxu0 %v2011
      %2116 = vmatmul.mubr.bf16.gmra.mxu0 %v2010
      %v2117 = vpop.f32.mrf.mxu0
      %v2118 = vadd.f32 0.0, %v2117
      %v2119 = vpop.f32.mrf.mxu0
      %v2120 = vpop.f32.mrf.mxu0
      %v2121 = vadd.f32 0.0, %v2120
      %v2122 = vpop.f32.mrf.mxu0
      %2123 = vmatprep.mubr.bf16.mxu0 %v2013
      %2124 = vmatmul.mubr.bf16.gmra.mxu0 %v2012
      %v2125 = vpop.f32.mrf.mxu0
      %v2126 = vadd.f32 0.0, %v2125
      %v2127 = vpop.f32.mrf.mxu0
      %v2128 = vpop.f32.mrf.mxu0
      %v2129 = vadd.f32 0.0, %v2128
      %v2130 = vpop.f32.mrf.mxu0
      %2131 = vmatprep.mubr.bf16.mxu0 %v2015
      %2132 = vmatmul.mubr.bf16.gmra.mxu0 %v2014
      %v2133 = vpop.f32.mrf.mxu0
      %v2134 = vadd.f32 0.0, %v2133
      %v2135 = vpop.f32.mrf.mxu0
      %v2136 = vpop.f32.mrf.mxu0
      %v2137 = vadd.f32 0.0, %v2136
      %v2138 = vpop.f32.mrf.mxu0
      %2139 = vmatprep.mubr.bf16.mxu0 %v2017
      %2140 = vmatmul.mubr.bf16.gmra.mxu0 %v2016
      %v2141 = vpop.f32.mrf.mxu0
      %v2142 = vadd.f32 0.0, %v2141
      %v2143 = vpop.f32.mrf.mxu0
      %v2144 = vpop.f32.mrf.mxu0
      %v2145 = vadd.f32 0.0, %v2144
      %v2146 = vpop.f32.mrf.mxu0
      %2147 = vdwg.mxu0
      %v2148 = vrcp.pop %v2118
      %v2149 = vmul.f32 %v2053, %v2148
      %v2150 = vrcp.pop %v2121
      %v2151 = vmul.f32 %v2056, %v2150
      %v2152 = vrcp.pop %v2126
      %v2153 = vmul.f32 %v2061, %v2152
      %v2154 = vrcp.pop %v2129
      %v2155 = vmul.f32 %v2064, %v2154
      %v2156 = vrcp.pop %v2134
      %v2157 = vmul.f32 %v2069, %v2156
      %v2158 = vrcp.pop %v2137
      %v2159 = vmul.f32 %v2072, %v2158
      %v2160 = vrcp.pop %v2142
      %v2161 = vmul.f32 %v2077, %v2160
      %v2162 = vrcp.pop %v2145
      %v2163 = vmul.f32 %v2080, %v2162
      %v2164 = vpack.c.bf16 %v2151, %v2149
      %v2165 = vpack.c.bf16 %v2155, %v2153
      %v2166 = vpack.c.bf16 %v2159, %v2157
      %v2167 = vpack.c.bf16 %v2163, %v2161
      %v2172 = vunpack.c.l.b16 %v2164
      %v2173 = vunpack.c.h.b16 %v2164
      %v2174 = vunpack.c.l.b16 %v2165
      %v2175 = vunpack.c.h.b16 %v2165
      %v2176 = vunpack.c.l.b16 %v2166
      %v2177 = vunpack.c.h.b16 %v2166
      %v2178 = vunpack.c.l.b16 %v2167
      %v2179 = vunpack.c.h.b16 %v2167
      %v2180 = vpack.c.b16 %v2172, %v2172
      %v2181 = vpack.c.b16 %v2173, %v2173
      %v2182 = vpack.c.b16 %v2174, %v2174
      %v2183 = vpack.c.b16 %v2175, %v2175
      %v2184 = vpack.c.b16 %v2176, %v2176
      %v2185 = vpack.c.b16 %v2177, %v2177
      %v2186 = vpack.c.b16 %v2178, %v2178
      %v2187 = vpack.c.b16 %v2179, %v2179
      %s2196 = smul.addr %s1546, 4
      %s2197 = scalar_lea.vmem [#allocation5], %s2196
      %2198 = vst.msk [vmem:[%s2197] sm:$0xf] %vm930, %v2180
      %2199 = vst.msk [vmem:[%s2197 + $0x4] sm:$0xf] %vm930, %v2181
      %2200 = vst.msk [vmem:[%s2197 + $0x8] sm:$0xf] %vm930, %v2182
      %2201 = vst.msk [vmem:[%s2197 + $0xc] sm:$0xf] %vm930, %v2183
      %2202 = vst.msk [vmem:[%s2197 + $0x10] sm:$0xf] %vm930, %v2184
      %2203 = vst.msk [vmem:[%s2197 + $0x14] sm:$0xf] %vm930, %v2185
      %2204 = vst.msk [vmem:[%s2197 + $0x18] sm:$0xf] %vm930, %v2186
      %2205 = vst.msk [vmem:[%s2197 + $0x1c] sm:$0xf] %vm930, %v2187
    $region38: #{tpu_custom_call.1} parent=1 // loop_footer
      %s1544 = sadd.s32 1, %s1540
    $region39: #{tpu_custom_call.1} parent=1 // loop_footer_branch
      %1539 = sbr.rel target = $region35
    $region40: #{tpu_custom_call.1} parent=1 // loop_exit
      _
    %v2206 = vld [vmem:[#allocation5] sm:$0xf]
    %v2207 = vld [vmem:[#allocation5 + $0x4] sm:$0xf]
    %v2208 = vld [vmem:[#allocation5 + $0x8] sm:$0xf]
    %v2209 = vld [vmem:[#allocation5 + $0xc] sm:$0xf]
    %v2210 = vld [vmem:[#allocation5 + $0x10] sm:$0xf]
    %v2211 = vld [vmem:[#allocation5 + $0x14] sm:$0xf]
    %v2212 = vld [vmem:[#allocation5 + $0x18] sm:$0xf]
    %v2213 = vld [vmem:[#allocation5 + $0x1c] sm:$0xf]
    %v2214 = vld [vmem:[#allocation5 + $0x20] sm:$0xf]
    %v2215 = vld [vmem:[#allocation5 + $0x24] sm:$0xf]
    %v2216 = vld [vmem:[#allocation5 + $0x28] sm:$0xf]
    %v2217 = vld [vmem:[#allocation5 + $0x2c] sm:$0xf]
    %v2218 = vld [vmem:[#allocation5 + $0x30] sm:$0xf]
    %v2219 = vld [vmem:[#allocation5 + $0x34] sm:$0xf]
    %v2220 = vld [vmem:[#allocation5 + $0x38] sm:$0xf]
    %v2221 = vld [vmem:[#allocation5 + $0x3c] sm:$0xf]
    %v2222 = vld [vmem:[#allocation5 + $0x40] sm:$0xf]
    %v2223 = vld [vmem:[#allocation5 + $0x44] sm:$0xf]
    %v2224 = vld [vmem:[#allocation5 + $0x48] sm:$0xf]
    %v2225 = vld [vmem:[#allocation5 + $0x4c] sm:$0xf]
    %v2226 = vld [vmem:[#allocation5 + $0x50] sm:$0xf]
    %v2227 = vld [vmem:[#allocation5 + $0x54] sm:$0xf]
    %v2228 = vld [vmem:[#allocation5 + $0x58] sm:$0xf]
    %v2229 = vld [vmem:[#allocation5 + $0x5c] sm:$0xf]
    %v2230 = vld [vmem:[#allocation5 + $0x60] sm:$0xf]
    %v2231 = vld [vmem:[#allocation5 + $0x64] sm:$0xf]
    %v2232 = vld [vmem:[#allocation5 + $0x68] sm:$0xf]
    %v2233 = vld [vmem:[#allocation5 + $0x6c] sm:$0xf]
    %v2234 = vld [vmem:[#allocation5 + $0x70] sm:$0xf]
    %v2235 = vld [vmem:[#allocation5 + $0x74] sm:$0xf]
    %v2236 = vld [vmem:[#allocation5 + $0x78] sm:$0xf]
    %v2237 = vld [vmem:[#allocation5 + $0x7c] sm:$0xf]
    %v2238 = vld [vmem:[#allocation5 + $0x80] sm:$0xf]
    %v2239 = vld [vmem:[#allocation5 + $0x84] sm:$0xf]
    %v2240 = vld [vmem:[#allocation5 + $0x88] sm:$0xf]
    %v2241 = vld [vmem:[#allocation5 + $0x8c] sm:$0xf]
    %v2242 = vld [vmem:[#allocation5 + $0x90] sm:$0xf]
    %v2243 = vld [vmem:[#allocation5 + $0x94] sm:$0xf]
    %v2244 = vld [vmem:[#allocation5 + $0x98] sm:$0xf]
    %v2245 = vld [vmem:[#allocation5 + $0x9c] sm:$0xf]
    %v2246 = vld [vmem:[#allocation5 + $0xa0] sm:$0xf]
    %v2247 = vld [vmem:[#allocation5 + $0xa4] sm:$0xf]
    %v2248 = vld [vmem:[#allocation5 + $0xa8] sm:$0xf]
    %v2249 = vld [vmem:[#allocation5 + $0xac] sm:$0xf]
    %v2250 = vld [vmem:[#allocation5 + $0xb0] sm:$0xf]
    %v2251 = vld [vmem:[#allocation5 + $0xb4] sm:$0xf]
    %v2252 = vld [vmem:[#allocation5 + $0xb8] sm:$0xf]
    %v2253 = vld [vmem:[#allocation5 + $0xbc] sm:$0xf]
    %v2254 = vld [vmem:[#allocation5 + $0xc0] sm:$0xf]
    %v2255 = vld [vmem:[#allocation5 + $0xc4] sm:$0xf]
    %v2256 = vld [vmem:[#allocation5 + $0xc8] sm:$0xf]
    %v2257 = vld [vmem:[#allocation5 + $0xcc] sm:$0xf]
    %v2258 = vld [vmem:[#allocation5 + $0xd0] sm:$0xf]
    %v2259 = vld [vmem:[#allocation5 + $0xd4] sm:$0xf]
    %v2260 = vld [vmem:[#allocation5 + $0xd8] sm:$0xf]
    %v2261 = vld [vmem:[#allocation5 + $0xdc] sm:$0xf]
    %v2262 = vld [vmem:[#allocation5 + $0xe0] sm:$0xf]
    %v2263 = vld [vmem:[#allocation5 + $0xe4] sm:$0xf]
    %v2264 = vld [vmem:[#allocation5 + $0xe8] sm:$0xf]
    %v2265 = vld [vmem:[#allocation5 + $0xec] sm:$0xf]
    %v2266 = vld [vmem:[#allocation5 + $0xf0] sm:$0xf]
    %v2267 = vld [vmem:[#allocation5 + $0xf4] sm:$0xf]
    %v2268 = vld [vmem:[#allocation5 + $0xf8] sm:$0xf]
    %v2269 = vld [vmem:[#allocation5 + $0xfc] sm:$0xf]
    %v2270 = vld [vmem:[%s3] sm:$0xf]
    %v2271 = vld [vmem:[%s3 + $0x4] sm:$0xf]
    %v2272 = vld [vmem:[%s3 + $0x8] sm:$0xf]
    %v2273 = vld [vmem:[%s3 + $0xc] sm:$0xf]
    %v2274 = vld [vmem:[%s4] sm:$0x1]
    %v2276 = vlaneseq
    %v2277 = vshrl.u32 %v2276, 7
    %v2278 = vsub.s32 0, %v2277
    %v2279 = vrot.slane %v2274, %v2278
    %v2345 = vunpack.c.l.b16 %v2206
    %v2346 = vunpack.c.l.b16 %v2207
    %v2347 = vunpack.c.l.b16 %v2208
    %v2348 = vunpack.c.l.b16 %v2209
    %v2349 = vunpack.c.l.b16 %v2210
    %v2350 = vunpack.c.l.b16 %v2211
    %v2351 = vunpack.c.l.b16 %v2212
    %v2352 = vunpack.c.l.b16 %v2213
    %v2353 = vunpack.c.l.b16 %v2214
    %v2354 = vunpack.c.l.b16 %v2215
    %v2355 = vunpack.c.l.b16 %v2216
    %v2356 = vunpack.c.l.b16 %v2217
    %v2357 = vunpack.c.l.b16 %v2218
    %v2358 = vunpack.c.l.b16 %v2219
    %v2359 = vunpack.c.l.b16 %v2220
    %v2360 = vunpack.c.l.b16 %v2221
    %v2361 = vunpack.c.l.b16 %v2222
    %v2362 = vunpack.c.l.b16 %v2223
    %v2363 = vunpack.c.l.b16 %v2224
    %v2364 = vunpack.c.l.b16 %v2225
    %v2365 = vunpack.c.l.b16 %v2226
    %v2366 = vunpack.c.l.b16 %v2227
    %v2367 = vunpack.c.l.b16 %v2228
    %v2368 = vunpack.c.l.b16 %v2229
    %v2369 = vunpack.c.l.b16 %v2230
    %v2370 = vunpack.c.l.b16 %v2231
    %v2371 = vunpack.c.l.b16 %v2232
    %v2372 = vunpack.c.l.b16 %v2233
    %v2373 = vunpack.c.l.b16 %v2234
    %v2374 = vunpack.c.l.b16 %v2235
    %v2375 = vunpack.c.l.b16 %v2236
    %v2376 = vunpack.c.l.b16 %v2237
    %v2377 = vunpack.c.l.b16 %v2238
    %v2378 = vunpack.c.l.b16 %v2239
    %v2379 = vunpack.c.l.b16 %v2240
    %v2380 = vunpack.c.l.b16 %v2241
    %v2381 = vunpack.c.l.b16 %v2242
    %v2382 = vunpack.c.l.b16 %v2243
    %v2383 = vunpack.c.l.b16 %v2244
    %v2384 = vunpack.c.l.b16 %v2245
    %v2385 = vunpack.c.l.b16 %v2246
    %v2386 = vunpack.c.l.b16 %v2247
    %v2387 = vunpack.c.l.b16 %v2248
    %v2388 = vunpack.c.l.b16 %v2249
    %v2389 = vunpack.c.l.b16 %v2250
    %v2390 = vunpack.c.l.b16 %v2251
    %v2391 = vunpack.c.l.b16 %v2252
    %v2392 = vunpack.c.l.b16 %v2253
    %v2393 = vunpack.c.l.b16 %v2254
    %v2394 = vunpack.c.l.b16 %v2255
    %v2395 = vunpack.c.l.b16 %v2256
    %v2396 = vunpack.c.l.b16 %v2257
    %v2397 = vunpack.c.l.b16 %v2258
    %v2398 = vunpack.c.l.b16 %v2259
    %v2399 = vunpack.c.l.b16 %v2260
    %v2400 = vunpack.c.l.b16 %v2261
    %v2401 = vunpack.c.l.b16 %v2262
    %v2402 = vunpack.c.l.b16 %v2263
    %v2403 = vunpack.c.l.b16 %v2264
    %v2404 = vunpack.c.l.b16 %v2265
    %v2405 = vunpack.c.l.b16 %v2266
    %v2406 = vunpack.c.l.b16 %v2267
    %v2407 = vunpack.c.l.b16 %v2268
    %v2408 = vunpack.c.l.b16 %v2269
    %v2409 = vpack.c.b16 %v2346, %v2345
    %v2410 = vpack.c.b16 %v2348, %v2347
    %v2411 = vpack.c.b16 %v2350, %v2349
    %v2412 = vpack.c.b16 %v2352, %v2351
    %v2413 = vpack.c.b16 %v2354, %v2353
    %v2414 = vpack.c.b16 %v2356, %v2355
    %v2415 = vpack.c.b16 %v2358, %v2357
    %v2416 = vpack.c.b16 %v2360, %v2359
    %v2417 = vpack.c.b16 %v2362, %v2361
    %v2418 = vpack.c.b16 %v2364, %v2363
    %v2419 = vpack.c.b16 %v2366, %v2365
    %v2420 = vpack.c.b16 %v2368, %v2367
    %v2421 = vpack.c.b16 %v2370, %v2369
    %v2422 = vpack.c.b16 %v2372, %v2371
    %v2423 = vpack.c.b16 %v2374, %v2373
    %v2424 = vpack.c.b16 %v2376, %v2375
    %v2425 = vpack.c.b16 %v2378, %v2377
    %v2426 = vpack.c.b16 %v2380, %v2379
    %v2427 = vpack.c.b16 %v2382, %v2381
    %v2428 = vpack.c.b16 %v2384, %v2383
    %v2429 = vpack.c.b16 %v2386, %v2385
    %v2430 = vpack.c.b16 %v2388, %v2387
    %v2431 = vpack.c.b16 %v2390, %v2389
    %v2432 = vpack.c.b16 %v2392, %v2391
    %v2433 = vpack.c.b16 %v2394, %v2393
    %v2434 = vpack.c.b16 %v2396, %v2395
    %v2435 = vpack.c.b16 %v2398, %v2397
    %v2436 = vpack.c.b16 %v2400, %v2399
    %v2437 = vpack.c.b16 %v2402, %v2401
    %v2438 = vpack.c.b16 %v2404, %v2403
    %v2439 = vpack.c.b16 %v2406, %v2405
    %v2440 = vpack.c.b16 %v2408, %v2407
    %v2445 = vunpack.c.l.b16 %v2270
    %v2446 = vunpack.c.l.b16 %v2271
    %v2447 = vunpack.c.l.b16 %v2272
    %v2448 = vunpack.c.l.b16 %v2273
    %v2449 = vpack.c.b16 %v2446, %v2445
    %v2450 = vpack.c.b16 %v2448, %v2447
    %v2454 = vsel %vm288, %v2409, 0
    %v2457 = vsel %vm288, %v2410, 0
    %v2460 = vsel %vm288, %v2411, 0
    %v2463 = vsel %vm288, %v2412, 0
    %v2466 = vsel %vm288, %v2413, 0
    %v2469 = vsel %vm288, %v2414, 0
    %v2472 = vsel %vm288, %v2415, 0
    %v2475 = vsel %vm288, %v2416, 0
    %v2478 = vsel %vm288, %v2417, 0
    %v2481 = vsel %vm288, %v2418, 0
    %v2484 = vsel %vm288, %v2419, 0
    %v2487 = vsel %vm288, %v2420, 0
    %v2490 = vsel %vm288, %v2421, 0
    %v2493 = vsel %vm288, %v2422, 0
    %v2496 = vsel %vm288, %v2423, 0
    %v2499 = vsel %vm288, %v2424, 0
    %v2502 = vsel %vm288, %v2425, 0
    %v2505 = vsel %vm288, %v2426, 0
    %v2508 = vsel %vm288, %v2427, 0
    %v2511 = vsel %vm288, %v2428, 0
    %v2514 = vsel %vm288, %v2429, 0
    %v2517 = vsel %vm288, %v2430, 0
    %v2520 = vsel %vm288, %v2431, 0
    %v2523 = vsel %vm288, %v2432, 0
    %v2526 = vsel %vm288, %v2433, 0
    %v2529 = vsel %vm288, %v2434, 0
    %v2532 = vsel %vm288, %v2435, 0
    %v2535 = vsel %vm288, %v2436, 0
    %v2538 = vsel %vm288, %v2437, 0
    %v2541 = vsel %vm288, %v2438, 0
    %v2544 = vsel %vm288, %v2439, 0
    %v2547 = vsel %vm288, %v2440, 0
    %2549 = vmatprep.subr.bf16.mxu0 0
    %2550 = vmatpush1.bf16.msra.mxu0 0
    %2551 = vmatprep.subr.bf16.mxu0 0
    %2552 = vmatpush1.bf16.msra.mxu0 0
    %2553 = vmatprep.subr.bf16.mxu0 0
    %2554 = vmatpush1.bf16.msra.mxu0 0
    %2555 = vmatprep.subr.bf16.mxu0 0
    %2556 = vmatpush1.bf16.msra.mxu0 0
    %2557 = vmatprep.subr.bf16.mxu0 0
    %2558 = vmatpush1.bf16.msra.mxu0 0
    %2559 = vmatprep.subr.bf16.mxu0 0
    %2560 = vmatpush1.bf16.msra.mxu0 0
    %2561 = vmatprep.subr.bf16.mxu0 0
    %2562 = vmatpush1.bf16.msra.mxu0 %v2450
    %2563 = vmatprep.subr.bf16.mxu0 0
    %2564 = vmatpush1.bf16.msra.mxu0 %v2449
    %2565 = vmatprep.subr.bf16.mxu0 0
    %2566 = vmatpush2.bf16.msra.mxu0 0
    %2567 = vmatprep.subr.bf16.mxu0 0
    %2568 = vmatpush2.bf16.msra.mxu0 0
    %2569 = vmatprep.subr.bf16.mxu0 0
    %2570 = vmatpush2.bf16.msra.mxu0 0
    %2571 = vmatprep.subr.bf16.mxu0 0
    %2572 = vmatpush2.bf16.msra.mxu0 0
    %2573 = vmatprep.subr.bf16.mxu0 0
    %2574 = vmatpush2.bf16.msra.mxu0 0
    %2575 = vmatprep.subr.bf16.mxu0 0
    %2576 = vmatpush2.bf16.msra.mxu0 0
    %2577 = vmatprep.subr.bf16.mxu0 0
    %2578 = vmatpush2.bf16.msra.mxu0 0
    %2579 = vmatprep.subr.bf16.mxu0 0
    %2580 = vmatpush2.bf16.msra.mxu0 0
    %2581 = vmatprep.mubr.bf16.mxu0 0
    %2582 = vmatmul.mubr.bf16.gmra.mxu0 %v2454
    %v2583 = vpop.f32.mrf.mxu0
    %v2584 = vadd.f32 %v2279, %v2583
    %v2585 = vpop.f32.mrf.mxu0
    %v2586 = vpop.f32.mrf.mxu0
    %v2587 = vadd.f32 %v2279, %v2586
    %v2588 = vpop.f32.mrf.mxu0
    %2589 = vmatprep.mubr.bf16.mxu0 0
    %2590 = vmatmul.mubr.bf16.gmra.mxu0 %v2457
    %v2591 = vpop.f32.mrf.mxu0
    %v2592 = vadd.f32 %v2279, %v2591
    %v2593 = vpop.f32.mrf.mxu0
    %v2594 = vpop.f32.mrf.mxu0
    %v2595 = vadd.f32 %v2279, %v2594
    %v2596 = vpop.f32.mrf.mxu0
    %2597 = vmatprep.mubr.bf16.mxu0 0
    %2598 = vmatmul.mubr.bf16.gmra.mxu0 %v2460
    %v2599 = vpop.f32.mrf.mxu0
    %v2600 = vadd.f32 %v2279, %v2599
    %v2601 = vpop.f32.mrf.mxu0
    %v2602 = vpop.f32.mrf.mxu0
    %v2603 = vadd.f32 %v2279, %v2602
    %v2604 = vpop.f32.mrf.mxu0
    %2605 = vmatprep.mubr.bf16.mxu0 0
    %2606 = vmatmul.mubr.bf16.gmra.mxu0 %v2463
    %v2607 = vpop.f32.mrf.mxu0
    %v2608 = vadd.f32 %v2279, %v2607
    %v2609 = vpop.f32.mrf.mxu0
    %v2610 = vpop.f32.mrf.mxu0
    %v2611 = vadd.f32 %v2279, %v2610
    %v2612 = vpop.f32.mrf.mxu0
    %2613 = vmatprep.mubr.bf16.mxu0 0
    %2614 = vmatmul.mubr.bf16.gmra.mxu0 %v2466
    %v2615 = vpop.f32.mrf.mxu0
    %v2616 = vadd.f32 %v2279, %v2615
    %v2617 = vpop.f32.mrf.mxu0
    %v2618 = vpop.f32.mrf.mxu0
    %v2619 = vadd.f32 %v2279, %v2618
    %v2620 = vpop.f32.mrf.mxu0
    %2621 = vmatprep.mubr.bf16.mxu0 0
    %2622 = vmatmul.mubr.bf16.gmra.mxu0 %v2469
    %v2623 = vpop.f32.mrf.mxu0
    %v2624 = vadd.f32 %v2279, %v2623
    %v2625 = vpop.f32.mrf.mxu0
    %v2626 = vpop.f32.mrf.mxu0
    %v2627 = vadd.f32 %v2279, %v2626
    %v2628 = vpop.f32.mrf.mxu0
    %2629 = vmatprep.mubr.bf16.mxu0 0
    %2630 = vmatmul.mubr.bf16.gmra.mxu0 %v2472
    %v2631 = vpop.f32.mrf.mxu0
    %v2632 = vadd.f32 %v2279, %v2631
    %v2633 = vpop.f32.mrf.mxu0
    %v2634 = vpop.f32.mrf.mxu0
    %v2635 = vadd.f32 %v2279, %v2634
    %v2636 = vpop.f32.mrf.mxu0
    %2637 = vmatprep.mubr.bf16.mxu0 0
    %2638 = vmatmul.mubr.bf16.gmra.mxu0 %v2475
    %v2639 = vpop.f32.mrf.mxu0
    %v2640 = vadd.f32 %v2279, %v2639
    %v2641 = vpop.f32.mrf.mxu0
    %v2642 = vpop.f32.mrf.mxu0
    %v2643 = vadd.f32 %v2279, %v2642
    %v2644 = vpop.f32.mrf.mxu0
    %2645 = vmatprep.mubr.bf16.mxu0 0
    %2646 = vmatmul.mubr.bf16.gmra.mxu0 %v2478
    %v2647 = vpop.f32.mrf.mxu0
    %v2648 = vadd.f32 %v2279, %v2647
    %v2649 = vpop.f32.mrf.mxu0
    %v2650 = vpop.f32.mrf.mxu0
    %v2651 = vadd.f32 %v2279, %v2650
    %v2652 = vpop.f32.mrf.mxu0
    %2653 = vmatprep.mubr.bf16.mxu0 0
    %2654 = vmatmul.mubr.bf16.gmra.mxu0 %v2481
    %v2655 = vpop.f32.mrf.mxu0
    %v2656 = vadd.f32 %v2279, %v2655
    %v2657 = vpop.f32.mrf.mxu0
    %v2658 = vpop.f32.mrf.mxu0
    %v2659 = vadd.f32 %v2279, %v2658
    %v2660 = vpop.f32.mrf.mxu0
    %2661 = vmatprep.mubr.bf16.mxu0 0
    %2662 = vmatmul.mubr.bf16.gmra.mxu0 %v2484
    %v2663 = vpop.f32.mrf.mxu0
    %v2664 = vadd.f32 %v2279, %v2663
    %v2665 = vpop.f32.mrf.mxu0
    %v2666 = vpop.f32.mrf.mxu0
    %v2667 = vadd.f32 %v2279, %v2666
    %v2668 = vpop.f32.mrf.mxu0
    %2669 = vmatprep.mubr.bf16.mxu0 0
    %2670 = vmatmul.mubr.bf16.gmra.mxu0 %v2487
    %v2671 = vpop.f32.mrf.mxu0
    %v2672 = vadd.f32 %v2279, %v2671
    %v2673 = vpop.f32.mrf.mxu0
    %v2674 = vpop.f32.mrf.mxu0
    %v2675 = vadd.f32 %v2279, %v2674
    %v2676 = vpop.f32.mrf.mxu0
    %2677 = vmatprep.mubr.bf16.mxu0 0
    %2678 = vmatmul.mubr.bf16.gmra.mxu0 %v2490
    %v2679 = vpop.f32.mrf.mxu0
    %v2680 = vadd.f32 %v2279, %v2679
    %v2681 = vpop.f32.mrf.mxu0
    %v2682 = vpop.f32.mrf.mxu0
    %v2683 = vadd.f32 %v2279, %v2682
    %v2684 = vpop.f32.mrf.mxu0
    %2685 = vmatprep.mubr.bf16.mxu0 0
    %2686 = vmatmul.mubr.bf16.gmra.mxu0 %v2493
    %v2687 = vpop.f32.mrf.mxu0
    %v2688 = vadd.f32 %v2279, %v2687
    %v2689 = vpop.f32.mrf.mxu0
    %v2690 = vpop.f32.mrf.mxu0
    %v2691 = vadd.f32 %v2279, %v2690
    %v2692 = vpop.f32.mrf.mxu0
    %2693 = vmatprep.mubr.bf16.mxu0 0
    %2694 = vmatmul.mubr.bf16.gmra.mxu0 %v2496
    %v2695 = vpop.f32.mrf.mxu0
    %v2696 = vadd.f32 %v2279, %v2695
    %v2697 = vpop.f32.mrf.mxu0
    %v2698 = vpop.f32.mrf.mxu0
    %v2699 = vadd.f32 %v2279, %v2698
    %v2700 = vpop.f32.mrf.mxu0
    %2701 = vmatprep.mubr.bf16.mxu0 0
    %2702 = vmatmul.mubr.bf16.gmra.mxu0 %v2499
    %v2703 = vpop.f32.mrf.mxu0
    %v2704 = vadd.f32 %v2279, %v2703
    %v2705 = vpop.f32.mrf.mxu0
    %v2706 = vpop.f32.mrf.mxu0
    %v2707 = vadd.f32 %v2279, %v2706
    %v2708 = vpop.f32.mrf.mxu0
    %2709 = vmatprep.mubr.bf16.mxu0 0
    %2710 = vmatmul.mubr.bf16.gmra.mxu0 %v2502
    %v2711 = vpop.f32.mrf.mxu0
    %v2712 = vadd.f32 %v2279, %v2711
    %v2713 = vpop.f32.mrf.mxu0
    %v2714 = vpop.f32.mrf.mxu0
    %v2715 = vadd.f32 %v2279, %v2714
    %v2716 = vpop.f32.mrf.mxu0
    %2717 = vmatprep.mubr.bf16.mxu0 0
    %2718 = vmatmul.mubr.bf16.gmra.mxu0 %v2505
    %v2719 = vpop.f32.mrf.mxu0
    %v2720 = vadd.f32 %v2279, %v2719
    %v2721 = vpop.f32.mrf.mxu0
    %v2722 = vpop.f32.mrf.mxu0
    %v2723 = vadd.f32 %v2279, %v2722
    %v2724 = vpop.f32.mrf.mxu0
    %2725 = vmatprep.mubr.bf16.mxu0 0
    %2726 = vmatmul.mubr.bf16.gmra.mxu0 %v2508
    %v2727 = vpop.f32.mrf.mxu0
    %v2728 = vadd.f32 %v2279, %v2727
    %v2729 = vpop.f32.mrf.mxu0
    %v2730 = vpop.f32.mrf.mxu0
    %v2731 = vadd.f32 %v2279, %v2730
    %v2732 = vpop.f32.mrf.mxu0
    %2733 = vmatprep.mubr.bf16.mxu0 0
    %2734 = vmatmul.mubr.bf16.gmra.mxu0 %v2511
    %v2735 = vpop.f32.mrf.mxu0
    %v2736 = vadd.f32 %v2279, %v2735
    %v2737 = vpop.f32.mrf.mxu0
    %v2738 = vpop.f32.mrf.mxu0
    %v2739 = vadd.f32 %v2279, %v2738
    %v2740 = vpop.f32.mrf.mxu0
    %2741 = vmatprep.mubr.bf16.mxu0 0
    %2742 = vmatmul.mubr.bf16.gmra.mxu0 %v2514
    %v2743 = vpop.f32.mrf.mxu0
    %v2744 = vadd.f32 %v2279, %v2743
    %v2745 = vpop.f32.mrf.mxu0
    %v2746 = vpop.f32.mrf.mxu0
    %v2747 = vadd.f32 %v2279, %v2746
    %v2748 = vpop.f32.mrf.mxu0
    %2749 = vmatprep.mubr.bf16.mxu0 0
    %2750 = vmatmul.mubr.bf16.gmra.mxu0 %v2517
    %v2751 = vpop.f32.mrf.mxu0
    %v2752 = vadd.f32 %v2279, %v2751
    %v2753 = vpop.f32.mrf.mxu0
    %v2754 = vpop.f32.mrf.mxu0
    %v2755 = vadd.f32 %v2279, %v2754
    %v2756 = vpop.f32.mrf.mxu0
    %2757 = vmatprep.mubr.bf16.mxu0 0
    %2758 = vmatmul.mubr.bf16.gmra.mxu0 %v2520
    %v2759 = vpop.f32.mrf.mxu0
    %v2760 = vadd.f32 %v2279, %v2759
    %v2761 = vpop.f32.mrf.mxu0
    %v2762 = vpop.f32.mrf.mxu0
    %v2763 = vadd.f32 %v2279, %v2762
    %v2764 = vpop.f32.mrf.mxu0
    %2765 = vmatprep.mubr.bf16.mxu0 0
    %2766 = vmatmul.mubr.bf16.gmra.mxu0 %v2523
    %v2767 = vpop.f32.mrf.mxu0
    %v2768 = vadd.f32 %v2279, %v2767
    %v2769 = vpop.f32.mrf.mxu0
    %v2770 = vpop.f32.mrf.mxu0
    %v2771 = vadd.f32 %v2279, %v2770
    %v2772 = vpop.f32.mrf.mxu0
    %2773 = vmatprep.mubr.bf16.mxu0 0
    %2774 = vmatmul.mubr.bf16.gmra.mxu0 %v2526
    %v2775 = vpop.f32.mrf.mxu0
    %v2776 = vadd.f32 %v2279, %v2775
    %v2777 = vpop.f32.mrf.mxu0
    %v2778 = vpop.f32.mrf.mxu0
    %v2779 = vadd.f32 %v2279, %v2778
    %v2780 = vpop.f32.mrf.mxu0
    %2781 = vmatprep.mubr.bf16.mxu0 0
    %2782 = vmatmul.mubr.bf16.gmra.mxu0 %v2529
    %v2783 = vpop.f32.mrf.mxu0
    %v2784 = vadd.f32 %v2279, %v2783
    %v2785 = vpop.f32.mrf.mxu0
    %v2786 = vpop.f32.mrf.mxu0
    %v2787 = vadd.f32 %v2279, %v2786
    %v2788 = vpop.f32.mrf.mxu0
    %2789 = vmatprep.mubr.bf16.mxu0 0
    %2790 = vmatmul.mubr.bf16.gmra.mxu0 %v2532
    %v2791 = vpop.f32.mrf.mxu0
    %v2792 = vadd.f32 %v2279, %v2791
    %v2793 = vpop.f32.mrf.mxu0
    %v2794 = vpop.f32.mrf.mxu0
    %v2795 = vadd.f32 %v2279, %v2794
    %v2796 = vpop.f32.mrf.mxu0
    %2797 = vmatprep.mubr.bf16.mxu0 0
    %2798 = vmatmul.mubr.bf16.gmra.mxu0 %v2535
    %v2799 = vpop.f32.mrf.mxu0
    %v2800 = vadd.f32 %v2279, %v2799
    %v2801 = vpop.f32.mrf.mxu0
    %v2802 = vpop.f32.mrf.mxu0
    %v2803 = vadd.f32 %v2279, %v2802
    %v2804 = vpop.f32.mrf.mxu0
    %2805 = vmatprep.mubr.bf16.mxu0 0
    %2806 = vmatmul.mubr.bf16.gmra.mxu0 %v2538
    %v2807 = vpop.f32.mrf.mxu0
    %v2808 = vadd.f32 %v2279, %v2807
    %v2809 = vpop.f32.mrf.mxu0
    %v2810 = vpop.f32.mrf.mxu0
    %v2811 = vadd.f32 %v2279, %v2810
    %v2812 = vpop.f32.mrf.mxu0
    %2813 = vmatprep.mubr.bf16.mxu0 0
    %2814 = vmatmul.mubr.bf16.gmra.mxu0 %v2541
    %v2815 = vpop.f32.mrf.mxu0
    %v2816 = vadd.f32 %v2279, %v2815
    %v2817 = vpop.f32.mrf.mxu0
    %v2818 = vpop.f32.mrf.mxu0
    %v2819 = vadd.f32 %v2279, %v2818
    %v2820 = vpop.f32.mrf.mxu0
    %2821 = vmatprep.mubr.bf16.mxu0 0
    %2822 = vmatmul.mubr.bf16.gmra.mxu0 %v2544
    %v2823 = vpop.f32.mrf.mxu0
    %v2824 = vadd.f32 %v2279, %v2823
    %v2825 = vpop.f32.mrf.mxu0
    %v2826 = vpop.f32.mrf.mxu0
    %v2827 = vadd.f32 %v2279, %v2826
    %v2828 = vpop.f32.mrf.mxu0
    %2829 = vmatprep.mubr.bf16.mxu0 0
    %2830 = vmatmul.mubr.bf16.gmra.mxu0 %v2547
    %v2831 = vpop.f32.mrf.mxu0
    %v2832 = vadd.f32 %v2279, %v2831
    %v2833 = vpop.f32.mrf.mxu0
    %v2834 = vpop.f32.mrf.mxu0
    %v2835 = vadd.f32 %v2279, %v2834
    %v2836 = vpop.f32.mrf.mxu0
    %2837 = vdwg.mxu0
    %2838 = vst.msk [vmem:[%s7] sm:$0xff] %vm288, %v2584
    %2839 = vst.msk [vmem:[%s7 + $0x8] sm:$0xff] %vm288, %v2587
    %2840 = vst.msk [vmem:[%s7 + $0x10] sm:$0xff] %vm288, %v2592
    %2841 = vst.msk [vmem:[%s7 + $0x18] sm:$0xff] %vm288, %v2595
    %2842 = vst.msk [vmem:[%s7 + $0x20] sm:$0xff] %vm288, %v2600
    %2843 = vst.msk [vmem:[%s7 + $0x28] sm:$0xff] %vm288, %v2603
    %2844 = vst.msk [vmem:[%s7 + $0x30] sm:$0xff] %vm288, %v2608
    %2845 = vst.msk [vmem:[%s7 + $0x38] sm:$0xff] %vm288, %v2611
    %2846 = vst.msk [vmem:[%s7 + $0x40] sm:$0xff] %vm288, %v2616
    %2847 = vst.msk [vmem:[%s7 + $0x48] sm:$0xff] %vm288, %v2619
    %2848 = vst.msk [vmem:[%s7 + $0x50] sm:$0xff] %vm288, %v2624
    %2849 = vst.msk [vmem:[%s7 + $0x58] sm:$0xff] %vm288, %v2627
    %2850 = vst.msk [vmem:[%s7 + $0x60] sm:$0xff] %vm288, %v2632
    %2851 = vst.msk [vmem:[%s7 + $0x68] sm:$0xff] %vm288, %v2635
    %2852 = vst.msk [vmem:[%s7 + $0x70] sm:$0xff] %vm288, %v2640
    %2853 = vst.msk [vmem:[%s7 + $0x78] sm:$0xff] %vm288, %v2643
    %2854 = vst.msk [vmem:[%s7 + $0x80] sm:$0xff] %vm288, %v2648
    %2855 = vst.msk [vmem:[%s7 + $0x88] sm:$0xff] %vm288, %v2651
    %2856 = vst.msk [vmem:[%s7 + $0x90] sm:$0xff] %vm288, %v2656
    %2857 = vst.msk [vmem:[%s7 + $0x98] sm:$0xff] %vm288, %v2659
    %2858 = vst.msk [vmem:[%s7 + $0xa0] sm:$0xff] %vm288, %v2664
    %2859 = vst.msk [vmem:[%s7 + $0xa8] sm:$0xff] %vm288, %v2667
    %2860 = vst.msk [vmem:[%s7 + $0xb0] sm:$0xff] %vm288, %v2672
    %2861 = vst.msk [vmem:[%s7 + $0xb8] sm:$0xff] %vm288, %v2675
    %2862 = vst.msk [vmem:[%s7 + $0xc0] sm:$0xff] %vm288, %v2680
    %2863 = vst.msk [vmem:[%s7 + $0xc8] sm:$0xff] %vm288, %v2683
    %2864 = vst.msk [vmem:[%s7 + $0xd0] sm:$0xff] %vm288, %v2688
    %2865 = vst.msk [vmem:[%s7 + $0xd8] sm:$0xff] %vm288, %v2691
    %2866 = vst.msk [vmem:[%s7 + $0xe0] sm:$0xff] %vm288, %v2696
    %2867 = vst.msk [vmem:[%s7 + $0xe8] sm:$0xff] %vm288, %v2699
    %2868 = vst.msk [vmem:[%s7 + $0xf0] sm:$0xff] %vm288, %v2704
    %2869 = vst.msk [vmem:[%s7 + $0xf8] sm:$0xff] %vm288, %v2707
    %2870 = vst.msk [vmem:[%s7 + $0x100] sm:$0xff] %vm288, %v2712
    %2871 = vst.msk [vmem:[%s7 + $0x108] sm:$0xff] %vm288, %v2715
    %2872 = vst.msk [vmem:[%s7 + $0x110] sm:$0xff] %vm288, %v2720
    %2873 = vst.msk [vmem:[%s7 + $0x118] sm:$0xff] %vm288, %v2723
    %2874 = vst.msk [vmem:[%s7 + $0x120] sm:$0xff] %vm288, %v2728
    %2875 = vst.msk [vmem:[%s7 + $0x128] sm:$0xff] %vm288, %v2731
    %2876 = vst.msk [vmem:[%s7 + $0x130] sm:$0xff] %vm288, %v2736
    %2877 = vst.msk [vmem:[%s7 + $0x138] sm:$0xff] %vm288, %v2739
    %2878 = vst.msk [vmem:[%s7 + $0x140] sm:$0xff] %vm288, %v2744
    %2879 = vst.msk [vmem:[%s7 + $0x148] sm:$0xff] %vm288, %v2747
    %2880 = vst.msk [vmem:[%s7 + $0x150] sm:$0xff] %vm288, %v2752
    %2881 = vst.msk [vmem:[%s7 + $0x158] sm:$0xff] %vm288, %v2755
    %2882 = vst.msk [vmem:[%s7 + $0x160] sm:$0xff] %vm288, %v2760
    %2883 = vst.msk [vmem:[%s7 + $0x168] sm:$0xff] %vm288, %v2763
    %2884 = vst.msk [vmem:[%s7 + $0x170] sm:$0xff] %vm288, %v2768
    %2885 = vst.msk [vmem:[%s7 + $0x178] sm:$0xff] %vm288, %v2771
    %2886 = vst.msk [vmem:[%s7 + $0x180] sm:$0xff] %vm288, %v2776
    %2887 = vst.msk [vmem:[%s7 + $0x188] sm:$0xff] %vm288, %v2779
    %2888 = vst.msk [vmem:[%s7 + $0x190] sm:$0xff] %vm288, %v2784
    %2889 = vst.msk [vmem:[%s7 + $0x198] sm:$0xff] %vm288, %v2787
    %2890 = vst.msk [vmem:[%s7 + $0x1a0] sm:$0xff] %vm288, %v2792
    %2891 = vst.msk [vmem:[%s7 + $0x1a8] sm:$0xff] %vm288, %v2795
    %2892 = vst.msk [vmem:[%s7 + $0x1b0] sm:$0xff] %vm288, %v2800
    %2893 = vst.msk [vmem:[%s7 + $0x1b8] sm:$0xff] %vm288, %v2803
    %2894 = vst.msk [vmem:[%s7 + $0x1c0] sm:$0xff] %vm288, %v2808
    %2895 = vst.msk [vmem:[%s7 + $0x1c8] sm:$0xff] %vm288, %v2811
    %2896 = vst.msk [vmem:[%s7 + $0x1d0] sm:$0xff] %vm288, %v2816
    %2897 = vst.msk [vmem:[%s7 + $0x1d8] sm:$0xff] %vm288, %v2819
    %2898 = vst.msk [vmem:[%s7 + $0x1e0] sm:$0xff] %vm288, %v2824
    %2899 = vst.msk [vmem:[%s7 + $0x1e8] sm:$0xff] %vm288, %v2827
    %2900 = vst.msk [vmem:[%s7 + $0x1f0] sm:$0xff] %vm288, %v2832
    %2901 = vst.msk [vmem:[%s7 + $0x1f8] sm:$0xff] %vm288, %v2835
    // Predicated region
    $region41: #{tpu_custom_call.1} parent=1 // pred_check
      _
    $region42: #{tpu_custom_call.1} parent=1 // pred_check_branch
      %2903 = sbr.rel (0) target = $region44
    $region43: #{tpu_custom_call.1} parent=1 // pred_region
      _
    $region44: #{tpu_custom_call.1} parent=1 // pred_fallthru
      _
    // Predicated region
    $region45: #{tpu_custom_call.1} parent=1 // pred_check
      _
    $region46: #{tpu_custom_call.1} parent=1 // pred_check_branch
      %2905 = sbr.rel (0) target = $region48
    $region47: #{tpu_custom_call.1} parent=1 // pred_region
      _
    $region48: #{tpu_custom_call.1} parent=1 // pred_fallthru
      _
    %2906 = vsyncpa [#allocation7], 1

</llo_original>
